<compile_context>
chip_gen: v5e
topology: v5e:2x2
jax: 0.10.0
libtpu: 0.0.40
codegen_flags: <defaults>
</compile_context>

<pallas_src>
import functools

import jax
import jax.numpy as jnp
import numpy as np
from jax import lax
from jax.experimental import pallas as pl
from jax.experimental.pallas import tpu as pltpu

D = 1024          # hidden size, hard-coded in the PyTorch module
STEP = 5          # self.step
ALPHA = 0.01      # self.alpha
BN_EPS = 1e-5     # nn.BatchNorm1d default eps
NORM_EPS = 1e-12  # F.normalize default eps


# ----------------------------------------------------------------------------
# Kernel 1: Hebbian memory (rank-STEP form) -> q rows, batch-blocked
# ----------------------------------------------------------------------------
def hebb_q_kernel(u_ref, y_ref, q_ref):
    """Grid axis = batch block (BB batch elements at a time).

    u_ref: (BB, STEP, D) f32   u_ref[b, s] = x_seq[b0 + b, s]   (keys == values)
    y_ref: (STEP, BB, D) f32   y_ref[i, b] = x[i * B + b0 + b]  (rows hit by
                               M_{b,i}; reproduces PyTorch's step-major cat vs
                               batch-major x index mismatch exactly)
    q_ref: (STEP, BB, D) bf16  q_ref[i, b] = M_{b0+b, i} @ y_ref[i, b]

    Exact rank-STEP identity (vectorized over the BB batch slots, which sit on
    the sublane axis -> full-sublane vregs):
      M_{b,i} @ y = sum_{s<=i} alpha * (u_s . y)
                                * prod_{t=s+1..i} (1 - alpha * u_t^2) * u_s
    """
    u = u_ref[...]                                   # (BB, STEP, D) f32
    u_s = [u[:, s, :] for s in range(STEP)]          # STEP x (BB, D)

    w = []          # w[s] = prod_{t=s+1..i}(1 - a*u_t^2) * u_s  (aged factors)
    rows = []
    for i in range(STEP):                            # static unroll, STEP == 5
        y_i = y_ref[i]                               # (BB, D)
        if i > 0:
            d_i = 1.0 - ALPHA * (u_s[i] * u_s[i])    # decay applied by step i
            w = [ws * d_i for ws in w]               # age the older rank-1 terms
        w.append(u_s[i])                             # fresh term, decay == 1

        acc = None
        for s in range(i + 1):
            dot = ALPHA * jnp.sum(u_s[s] * y_i, axis=1, keepdims=True)  # (BB, 1)
            term = dot * w[s]
            acc = term if acc is None else acc + term
        rows.append(acc)                             # (BB, D) f32

    # Single dense (STEP, BB, D) store, cast to bf16 on the way out.
    q_ref[...] = jnp.stack(rows, axis=0).astype(q_ref.dtype)


# ----------------------------------------------------------------------------
# Kernel 2a: z = fc1(q) on the MXU (bf16 in, f32 accumulate) + tile batch stats
# ----------------------------------------------------------------------------
def fc1_stats_kernel(q_ref, wt_ref, b_ref, z_ref, stats_ref, *, n_rows):
    tm = q_ref.shape[0]
    z = jnp.dot(q_ref[...], wt_ref[...],
                preferred_element_type=jnp.float32) + b_ref[...]
    z_ref[...] = z.astype(z_ref.dtype)               # bf16 store

    # Per-tile sum / sum-of-squares for BatchNorm1d batch statistics (f32);
    # mask padding rows of a partial tail tile *before* squaring.
    row = pl.program_id(0) * tm + lax.broadcasted_iota(jnp.int32, (tm, 1), 0)
    zm = jnp.where(row < n_rows, z, 0.0)
    s1 = jnp.sum(zm, axis=0, keepdims=True)
    s2 = jnp.sum(zm * zm, axis=0, keepdims=True)
    stats_ref[...] = jnp.concatenate([s1, s2], axis=0)   # one dense (2, D) store


# ----------------------------------------------------------------------------
# Kernel 2b: BN apply (folded scale/shift) + ReLU + row-wise L2 normalize
# ----------------------------------------------------------------------------
def bn_relu_norm_kernel(z_ref, scale_ref, shift_ref, out_ref):
    z = z_ref[...].astype(jnp.float32)               # bf16 -> f32
    h = jnp.maximum(z * scale_ref[...] + shift_ref[...], 0.0)      # BN + ReLU
    ssq = jnp.sum(h * h, axis=1, keepdims=True)
    # F.normalize: h / max(||h||, eps)  ==  h * rsqrt(max(||h||^2, eps^2))
    out_ref[...] = h * lax.rsqrt(jnp.maximum(ssq, NORM_EPS * NORM_EPS))


# ----------------------------------------------------------------------------
# Wrapper
# ----------------------------------------------------------------------------
def pc_encoding_forward(x, w_fc, b_fc, gamma, beta):
    n, d = x.shape
    assert d == D and n % STEP == 0
    B = n // STEP

    # ---- kernel 1: q[i*B + b] = M_{b,i} @ x[i*B + b] ------------------------
    # BB is either the whole batch (block dims equal full dims) or 64 (multiple
    # of 8 -> sublane-aligned), so the (8, 128) BlockSpec rule always holds and
    # partial tail blocks are handled by Pallas padding/drop.
    BB = B if B <= 64 else 64
    nb = (B + BB - 1) // BB

    xu = x.reshape(B, STEP, D)      # free view: xu[b, s] = x[b*STEP + s]
    xy = x.reshape(STEP, B, D)      # free view: xy[i, b] = x[i*B + b]

    q = pl.pallas_call(
        hebb_q_kernel,
        out_shape=jax.ShapeDtypeStruct((STEP, B, D), jnp.bfloat16),
        grid=(nb,),
        in_specs=[
            pl.BlockSpec((BB, STEP, D), lambda g: (g, 0, 0)),
            pl.BlockSpec((STEP, BB, D), lambda g: (0, g, 0)),
        ],
        out_specs=pl.BlockSpec((STEP, BB, D), lambda g: (0, g, 0)),
        compiler_params=pltpu.CompilerParams(
            dimension_semantics=("parallel",)),
    )(xu, xy).reshape(n, D)         # row j = i*B + b, matching torch.cat order

    # ---- kernel 2a: fc1 (bf16 MXU) + per-tile batch stats --------------------
    tm = n if n <= 1024 else 1024                    # row tile
    nt = (n + tm - 1) // tm
    w_t = w_fc.T.astype(jnp.bfloat16)                # one-time transpose + cast

    z, part = pl.pallas_call(
        functools.partial(fc1_stats_kernel, n_rows=n),
        out_shape=(jax.ShapeDtypeStruct((n, D), jnp.bfloat16),
                   jax.ShapeDtypeStruct((nt, 2, D), jnp.float32)),
        grid=(nt,),
        in_specs=[
            pl.BlockSpec((tm, D), lambda r: (r, 0)),
            pl.BlockSpec((D, D), lambda r: (0, 0)),   # Wt resident (bf16, 2 MiB)
            pl.BlockSpec((1, D), lambda r: (0, 0)),
        ],
        out_specs=(pl.BlockSpec((tm, D), lambda r: (r, 0)),
                   pl.BlockSpec((None, 2, D), lambda r: (r, 0, 0))),
        compiler_params=pltpu.CompilerParams(
            dimension_semantics=("parallel",)),
    )(q, w_t, b_fc.reshape(1, D))

    # ---- finalize BatchNorm1d training-mode statistics (tiny, O(D)) ----------
    s = jnp.sum(part, axis=0)                        # (2, D)
    mean = s[0] / n
    var = jnp.maximum(s[1] / n - mean * mean, 0.0)   # biased variance
    rstd = lax.rsqrt(var + BN_EPS)
    scale = (gamma * rstd).reshape(1, D)
    shift = (beta - mean * gamma * rstd).reshape(1, D)
    # TODO(synk): BatchNorm1d running-mean/var update (training side effect) is
    # not modeled; only the forward activation path is reproduced.

    # ---- kernel 2b: BN apply + ReLU + L2 normalize ---------------------------
    out = pl.pallas_call(
        bn_relu_norm_kernel,
        out_shape=jax.ShapeDtypeStruct((n, D), jnp.float32),
        grid=(nt,),
        in_specs=[
            pl.BlockSpec((tm, D), lambda r: (r, 0)),
            pl.BlockSpec((1, D), lambda r: (0, 0)),
            pl.BlockSpec((1, D), lambda r: (0, 0)),
        ],
        out_specs=pl.BlockSpec((tm, D), lambda r: (r, 0)),
        compiler_params=pltpu.CompilerParams(
            dimension_semantics=("parallel",)),
    )(z, scale, shift)
    return out


# ----------------------------------------------------------------------------
# Pure-JAX reference (mirrors the PyTorch forward exactly, f32 everywhere)
# ----------------------------------------------------------------------------
def pc_encoding_ref(x, w_fc, b_fc, gamma, beta):
    n = x.shape[0]
    B = n // STEP
    x_seq = x.reshape(B, STEP, D)
    m = jnp.zeros((B, D, D), jnp.float32)
    mems = []
    for i in range(STEP):
        k = x_seq[:, i, :][:, :, None]
        v = x_seq[:, i, :][:, None, :]
        m = m + ALPHA * (k * v - (k ** 2) * m)
        mems.append(m)
    memory_total = jnp.concatenate(mems, axis=0)          # step-major
    q = jnp.einsum('npq,nq->np', memory_total, x)         # x stays batch-major
    z = q @ w_fc.T + b_fc
    mean = z.mean(0, keepdims=True)
    var = ((z - mean) ** 2).mean(0, keepdims=True)
    h = jnp.maximum((z - mean) / jnp.sqrt(var + BN_EPS) * gamma + beta, 0.0)
    nrm = jnp.sqrt((h * h).sum(1, keepdims=True))
    return h / jnp.maximum(nrm, NORM_EPS)


if __name__ == "__main__":
    key = jax.random.PRNGKey(0)
    k_x, k_w, k_b = jax.random.split(key, 3)

    B = 2
    N = B * STEP                                  # x.size(0) must be B * step
    x = jax.random.normal(k_x, (N, D), dtype=jnp.float32)

    # Deterministic parameter init (PyTorch-default-like uniform for Linear,
    # gamma=1 / beta=0 for BatchNorm1d).
    bound = 1.0 / np.sqrt(D)
    w_fc = jax.random.uniform(k_w, (D, D), jnp.float32, -bound, bound)
    b_fc = jax.random.uniform(k_b, (D,), jnp.float32, -bound, bound)
    gamma = jnp.ones((D,), jnp.float32)
    beta = jnp.zeros((D,), jnp.float32)

    out = pc_encoding_forward(x, w_fc, b_fc, gamma, beta)
    out = jax.block_until_ready(out)

    ref = jax.block_until_ready(pc_encoding_ref(x, w_fc, b_fc, gamma, beta))
    np.testing.assert_allclose(np.asarray(out), np.asarray(ref),
                               rtol=1e-2, atol=5e-3)
    print("KERNEL_OK")
</pallas_src>

<mosaic_0001>
module attributes {stable_mosaic.version = 11 : i64} {
  func.func @hebb_q_kernel(%arg0: i32, %arg1: memref<2x5x1024xf32, #tpu.memory_space<vmem>>, %arg2: memref<5x2x1024xf32, #tpu.memory_space<vmem>>, %arg3: memref<5x2x1024xbf16, #tpu.memory_space<vmem>>) attributes {dimension_semantics = [#tpu.dimension_semantics<parallel>], iteration_bounds = array<i64: 1>, scalar_prefetch = 0 : i64, scratch_operands = 0 : i64, tpu.core_type = #tpu.core_type<tc>, window_params = [{transform_indices = @transform_0, window_bounds = array<i64: 2, 5, 1024>}, {transform_indices = @transform_1, window_bounds = array<i64: 5, 2, 1024>}, {transform_indices = @transform_2, window_bounds = array<i64: 5, 2, 1024>}]} {
    %c0 = arith.constant 0 : index
    %c0_0 = arith.constant 0 : index
    %c0_1 = arith.constant 0 : index
    %0 = vector.load %arg1[%c0, %c0_0, %c0_1] : memref<2x5x1024xf32, #tpu.memory_space<vmem>>, vector<2x5x1024xf32>
    %1 = vector.extract_strided_slice %0 {offsets = [0, 0, 0], sizes = [2, 1, 1024], strides = [1, 1, 1]} : vector<2x5x1024xf32> to vector<2x1x1024xf32>
    %2 = vector.shape_cast %1 : vector<2x1x1024xf32> to vector<2x1024xf32>
    %3 = vector.extract_strided_slice %0 {offsets = [0, 1, 0], sizes = [2, 1, 1024], strides = [1, 1, 1]} : vector<2x5x1024xf32> to vector<2x1x1024xf32>
    %4 = vector.shape_cast %3 : vector<2x1x1024xf32> to vector<2x1024xf32>
    %5 = vector.extract_strided_slice %0 {offsets = [0, 2, 0], sizes = [2, 1, 1024], strides = [1, 1, 1]} : vector<2x5x1024xf32> to vector<2x1x1024xf32>
    %6 = vector.shape_cast %5 : vector<2x1x1024xf32> to vector<2x1024xf32>
    %7 = vector.extract_strided_slice %0 {offsets = [0, 3, 0], sizes = [2, 1, 1024], strides = [1, 1, 1]} : vector<2x5x1024xf32> to vector<2x1x1024xf32>
    %8 = vector.shape_cast %7 : vector<2x1x1024xf32> to vector<2x1024xf32>
    %9 = vector.extract_strided_slice %0 {offsets = [0, 4, 0], sizes = [2, 1, 1024], strides = [1, 1, 1]} : vector<2x5x1024xf32> to vector<2x1x1024xf32>
    %10 = vector.shape_cast %9 : vector<2x1x1024xf32> to vector<2x1024xf32>
    %c0_2 = arith.constant 0 : index
    %c0_3 = arith.constant 0 : index
    %c0_4 = arith.constant 0 : index
    %11 = vector.load %arg2[%c0_2, %c0_3, %c0_4] : memref<5x2x1024xf32, #tpu.memory_space<vmem>>, vector<1x2x1024xf32>
    %12 = vector.shape_cast %11 : vector<1x2x1024xf32> to vector<2x1024xf32>
    %13 = arith.mulf %2, %12 : vector<2x1024xf32>
    %cst = arith.constant dense<0.000000e+00> : vector<2xf32>
    %14 = vector.multi_reduction <add>, %13, %cst [1] : vector<2x1024xf32> to vector<2xf32>
    %15 = vector.shape_cast %14 : vector<2xf32> to vector<2x1xf32>
    %cst_5 = arith.constant 0.00999999977 : f32
    %16 = vector.broadcast %cst_5 : f32 to vector<2x1xf32>
    %17 = arith.mulf %16, %15 : vector<2x1xf32>
    %18 = vector.broadcast %17 : vector<2x1xf32> to vector<2x1024xf32>
    %19 = arith.mulf %18, %2 : vector<2x1024xf32>
    %c1 = arith.constant 1 : index
    %c0_6 = arith.constant 0 : index
    %c0_7 = arith.constant 0 : index
    %20 = vector.load %arg2[%c1, %c0_6, %c0_7] : memref<5x2x1024xf32, #tpu.memory_space<vmem>>, vector<1x2x1024xf32>
    %21 = vector.shape_cast %20 : vector<1x2x1024xf32> to vector<2x1024xf32>
    %22 = arith.mulf %4, %4 : vector<2x1024xf32>
    %cst_8 = arith.constant 0.00999999977 : f32
    %23 = vector.broadcast %cst_8 : f32 to vector<2x1024xf32>
    %24 = arith.mulf %23, %22 : vector<2x1024xf32>
    %cst_9 = arith.constant 1.000000e+00 : f32
    %25 = vector.broadcast %cst_9 : f32 to vector<2x1024xf32>
    %26 = arith.subf %25, %24 : vector<2x1024xf32>
    %27 = arith.mulf %2, %26 : vector<2x1024xf32>
    %28 = arith.mulf %2, %21 : vector<2x1024xf32>
    %cst_10 = arith.constant dense<0.000000e+00> : vector<2xf32>
    %29 = vector.multi_reduction <add>, %28, %cst_10 [1] : vector<2x1024xf32> to vector<2xf32>
    %30 = vector.shape_cast %29 : vector<2xf32> to vector<2x1xf32>
    %cst_11 = arith.constant 0.00999999977 : f32
    %31 = vector.broadcast %cst_11 : f32 to vector<2x1xf32>
    %32 = arith.mulf %31, %30 : vector<2x1xf32>
    %33 = vector.broadcast %32 : vector<2x1xf32> to vector<2x1024xf32>
    %34 = arith.mulf %33, %27 : vector<2x1024xf32>
    %35 = arith.mulf %4, %21 : vector<2x1024xf32>
    %cst_12 = arith.constant dense<0.000000e+00> : vector<2xf32>
    %36 = vector.multi_reduction <add>, %35, %cst_12 [1] : vector<2x1024xf32> to vector<2xf32>
    %37 = vector.shape_cast %36 : vector<2xf32> to vector<2x1xf32>
    %cst_13 = arith.constant 0.00999999977 : f32
    %38 = vector.broadcast %cst_13 : f32 to vector<2x1xf32>
    %39 = arith.mulf %38, %37 : vector<2x1xf32>
    %40 = vector.broadcast %39 : vector<2x1xf32> to vector<2x1024xf32>
    %41 = arith.mulf %40, %4 : vector<2x1024xf32>
    %42 = arith.addf %34, %41 : vector<2x1024xf32>
    %c2 = arith.constant 2 : index
    %c0_14 = arith.constant 0 : index
    %c0_15 = arith.constant 0 : index
    %43 = vector.load %arg2[%c2, %c0_14, %c0_15] : memref<5x2x1024xf32, #tpu.memory_space<vmem>>, vector<1x2x1024xf32>
    %44 = vector.shape_cast %43 : vector<1x2x1024xf32> to vector<2x1024xf32>
    %45 = arith.mulf %6, %6 : vector<2x1024xf32>
    %cst_16 = arith.constant 0.00999999977 : f32
    %46 = vector.broadcast %cst_16 : f32 to vector<2x1024xf32>
    %47 = arith.mulf %46, %45 : vector<2x1024xf32>
    %cst_17 = arith.constant 1.000000e+00 : f32
    %48 = vector.broadcast %cst_17 : f32 to vector<2x1024xf32>
    %49 = arith.subf %48, %47 : vector<2x1024xf32>
    %50 = arith.mulf %27, %49 : vector<2x1024xf32>
    %51 = arith.mulf %4, %49 : vector<2x1024xf32>
    %52 = arith.mulf %2, %44 : vector<2x1024xf32>
    %cst_18 = arith.constant dense<0.000000e+00> : vector<2xf32>
    %53 = vector.multi_reduction <add>, %52, %cst_18 [1] : vector<2x1024xf32> to vector<2xf32>
    %54 = vector.shape_cast %53 : vector<2xf32> to vector<2x1xf32>
    %cst_19 = arith.constant 0.00999999977 : f32
    %55 = vector.broadcast %cst_19 : f32 to vector<2x1xf32>
    %56 = arith.mulf %55, %54 : vector<2x1xf32>
    %57 = vector.broadcast %56 : vector<2x1xf32> to vector<2x1024xf32>
    %58 = arith.mulf %57, %50 : vector<2x1024xf32>
    %59 = arith.mulf %4, %44 : vector<2x1024xf32>
    %cst_20 = arith.constant dense<0.000000e+00> : vector<2xf32>
    %60 = vector.multi_reduction <add>, %59, %cst_20 [1] : vector<2x1024xf32> to vector<2xf32>
    %61 = vector.shape_cast %60 : vector<2xf32> to vector<2x1xf32>
    %cst_21 = arith.constant 0.00999999977 : f32
    %62 = vector.broadcast %cst_21 : f32 to vector<2x1xf32>
    %63 = arith.mulf %62, %61 : vector<2x1xf32>
    %64 = vector.broadcast %63 : vector<2x1xf32> to vector<2x1024xf32>
    %65 = arith.mulf %64, %51 : vector<2x1024xf32>
    %66 = arith.addf %58, %65 : vector<2x1024xf32>
    %67 = arith.mulf %6, %44 : vector<2x1024xf32>
    %cst_22 = arith.constant dense<0.000000e+00> : vector<2xf32>
    %68 = vector.multi_reduction <add>, %67, %cst_22 [1] : vector<2x1024xf32> to vector<2xf32>
    %69 = vector.shape_cast %68 : vector<2xf32> to vector<2x1xf32>
    %cst_23 = arith.constant 0.00999999977 : f32
    %70 = vector.broadcast %cst_23 : f32 to vector<2x1xf32>
    %71 = arith.mulf %70, %69 : vector<2x1xf32>
    %72 = vector.broadcast %71 : vector<2x1xf32> to vector<2x1024xf32>
    %73 = arith.mulf %72, %6 : vector<2x1024xf32>
    %74 = arith.addf %66, %73 : vector<2x1024xf32>
    %c3 = arith.constant 3 : index
    %c0_24 = arith.constant 0 : index
    %c0_25 = arith.constant 0 : index
    %75 = vector.load %arg2[%c3, %c0_24, %c0_25] : memref<5x2x1024xf32, #tpu.memory_space<vmem>>, vector<1x2x1024xf32>
    %76 = vector.shape_cast %75 : vector<1x2x1024xf32> to vector<2x1024xf32>
    %77 = arith.mulf %8, %8 : vector<2x1024xf32>
    %cst_26 = arith.constant 0.00999999977 : f32
    %78 = vector.broadcast %cst_26 : f32 to vector<2x1024xf32>
    %79 = arith.mulf %78, %77 : vector<2x1024xf32>
    %cst_27 = arith.constant 1.000000e+00 : f32
    %80 = vector.broadcast %cst_27 : f32 to vector<2x1024xf32>
    %81 = arith.subf %80, %79 : vector<2x1024xf32>
    %82 = arith.mulf %50, %81 : vector<2x1024xf32>
    %83 = arith.mulf %51, %81 : vector<2x1024xf32>
    %84 = arith.mulf %6, %81 : vector<2x1024xf32>
    %85 = arith.mulf %2, %76 : vector<2x1024xf32>
    %cst_28 = arith.constant dense<0.000000e+00> : vector<2xf32>
    %86 = vector.multi_reduction <add>, %85, %cst_28 [1] : vector<2x1024xf32> to vector<2xf32>
    %87 = vector.shape_cast %86 : vector<2xf32> to vector<2x1xf32>
    %cst_29 = arith.constant 0.00999999977 : f32
    %88 = vector.broadcast %cst_29 : f32 to vector<2x1xf32>
    %89 = arith.mulf %88, %87 : vector<2x1xf32>
    %90 = vector.broadcast %89 : vector<2x1xf32> to vector<2x1024xf32>
    %91 = arith.mulf %90, %82 : vector<2x1024xf32>
    %92 = arith.mulf %4, %76 : vector<2x1024xf32>
    %cst_30 = arith.constant dense<0.000000e+00> : vector<2xf32>
    %93 = vector.multi_reduction <add>, %92, %cst_30 [1] : vector<2x1024xf32> to vector<2xf32>
    %94 = vector.shape_cast %93 : vector<2xf32> to vector<2x1xf32>
    %cst_31 = arith.constant 0.00999999977 : f32
    %95 = vector.broadcast %cst_31 : f32 to vector<2x1xf32>
    %96 = arith.mulf %95, %94 : vector<2x1xf32>
    %97 = vector.broadcast %96 : vector<2x1xf32> to vector<2x1024xf32>
    %98 = arith.mulf %97, %83 : vector<2x1024xf32>
    %99 = arith.addf %91, %98 : vector<2x1024xf32>
    %100 = arith.mulf %6, %76 : vector<2x1024xf32>
    %cst_32 = arith.constant dense<0.000000e+00> : vector<2xf32>
    %101 = vector.multi_reduction <add>, %100, %cst_32 [1] : vector<2x1024xf32> to vector<2xf32>
    %102 = vector.shape_cast %101 : vector<2xf32> to vector<2x1xf32>
    %cst_33 = arith.constant 0.00999999977 : f32
    %103 = vector.broadcast %cst_33 : f32 to vector<2x1xf32>
    %104 = arith.mulf %103, %102 : vector<2x1xf32>
    %105 = vector.broadcast %104 : vector<2x1xf32> to vector<2x1024xf32>
    %106 = arith.mulf %105, %84 : vector<2x1024xf32>
    %107 = arith.addf %99, %106 : vector<2x1024xf32>
    %108 = arith.mulf %8, %76 : vector<2x1024xf32>
    %cst_34 = arith.constant dense<0.000000e+00> : vector<2xf32>
    %109 = vector.multi_reduction <add>, %108, %cst_34 [1] : vector<2x1024xf32> to vector<2xf32>
    %110 = vector.shape_cast %109 : vector<2xf32> to vector<2x1xf32>
    %cst_35 = arith.constant 0.00999999977 : f32
    %111 = vector.broadcast %cst_35 : f32 to vector<2x1xf32>
    %112 = arith.mulf %111, %110 : vector<2x1xf32>
    %113 = vector.broadcast %112 : vector<2x1xf32> to vector<2x1024xf32>
    %114 = arith.mulf %113, %8 : vector<2x1024xf32>
    %115 = arith.addf %107, %114 : vector<2x1024xf32>
    %c4 = arith.constant 4 : index
    %c0_36 = arith.constant 0 : index
    %c0_37 = arith.constant 0 : index
    %116 = vector.load %arg2[%c4, %c0_36, %c0_37] : memref<5x2x1024xf32, #tpu.memory_space<vmem>>, vector<1x2x1024xf32>
    %117 = vector.shape_cast %116 : vector<1x2x1024xf32> to vector<2x1024xf32>
    %118 = arith.mulf %10, %10 : vector<2x1024xf32>
    %cst_38 = arith.constant 0.00999999977 : f32
    %119 = vector.broadcast %cst_38 : f32 to vector<2x1024xf32>
    %120 = arith.mulf %119, %118 : vector<2x1024xf32>
    %cst_39 = arith.constant 1.000000e+00 : f32
    %121 = vector.broadcast %cst_39 : f32 to vector<2x1024xf32>
    %122 = arith.subf %121, %120 : vector<2x1024xf32>
    %123 = arith.mulf %82, %122 : vector<2x1024xf32>
    %124 = arith.mulf %83, %122 : vector<2x1024xf32>
    %125 = arith.mulf %84, %122 : vector<2x1024xf32>
    %126 = arith.mulf %8, %122 : vector<2x1024xf32>
    %127 = arith.mulf %2, %117 : vector<2x1024xf32>
    %cst_40 = arith.constant dense<0.000000e+00> : vector<2xf32>
    %128 = vector.multi_reduction <add>, %127, %cst_40 [1] : vector<2x1024xf32> to vector<2xf32>
    %129 = vector.shape_cast %128 : vector<2xf32> to vector<2x1xf32>
    %cst_41 = arith.constant 0.00999999977 : f32
    %130 = vector.broadcast %cst_41 : f32 to vector<2x1xf32>
    %131 = arith.mulf %130, %129 : vector<2x1xf32>
    %132 = vector.broadcast %131 : vector<2x1xf32> to vector<2x1024xf32>
    %133 = arith.mulf %132, %123 : vector<2x1024xf32>
    %134 = arith.mulf %4, %117 : vector<2x1024xf32>
    %cst_42 = arith.constant dense<0.000000e+00> : vector<2xf32>
    %135 = vector.multi_reduction <add>, %134, %cst_42 [1] : vector<2x1024xf32> to vector<2xf32>
    %136 = vector.shape_cast %135 : vector<2xf32> to vector<2x1xf32>
    %cst_43 = arith.constant 0.00999999977 : f32
    %137 = vector.broadcast %cst_43 : f32 to vector<2x1xf32>
    %138 = arith.mulf %137, %136 : vector<2x1xf32>
    %139 = vector.broadcast %138 : vector<2x1xf32> to vector<2x1024xf32>
    %140 = arith.mulf %139, %124 : vector<2x1024xf32>
    %141 = arith.addf %133, %140 : vector<2x1024xf32>
    %142 = arith.mulf %6, %117 : vector<2x1024xf32>
    %cst_44 = arith.constant dense<0.000000e+00> : vector<2xf32>
    %143 = vector.multi_reduction <add>, %142, %cst_44 [1] : vector<2x1024xf32> to vector<2xf32>
    %144 = vector.shape_cast %143 : vector<2xf32> to vector<2x1xf32>
    %cst_45 = arith.constant 0.00999999977 : f32
    %145 = vector.broadcast %cst_45 : f32 to vector<2x1xf32>
    %146 = arith.mulf %145, %144 : vector<2x1xf32>
    %147 = vector.broadcast %146 : vector<2x1xf32> to vector<2x1024xf32>
    %148 = arith.mulf %147, %125 : vector<2x1024xf32>
    %149 = arith.addf %141, %148 : vector<2x1024xf32>
    %150 = arith.mulf %8, %117 : vector<2x1024xf32>
    %cst_46 = arith.constant dense<0.000000e+00> : vector<2xf32>
    %151 = vector.multi_reduction <add>, %150, %cst_46 [1] : vector<2x1024xf32> to vector<2xf32>
    %152 = vector.shape_cast %151 : vector<2xf32> to vector<2x1xf32>
    %cst_47 = arith.constant 0.00999999977 : f32
    %153 = vector.broadcast %cst_47 : f32 to vector<2x1xf32>
    %154 = arith.mulf %153, %152 : vector<2x1xf32>
    %155 = vector.broadcast %154 : vector<2x1xf32> to vector<2x1024xf32>
    %156 = arith.mulf %155, %126 : vector<2x1024xf32>
    %157 = arith.addf %149, %156 : vector<2x1024xf32>
    %158 = arith.mulf %10, %117 : vector<2x1024xf32>
    %cst_48 = arith.constant dense<0.000000e+00> : vector<2xf32>
    %159 = vector.multi_reduction <add>, %158, %cst_48 [1] : vector<2x1024xf32> to vector<2xf32>
    %160 = vector.shape_cast %159 : vector<2xf32> to vector<2x1xf32>
    %cst_49 = arith.constant 0.00999999977 : f32
    %161 = vector.broadcast %cst_49 : f32 to vector<2x1xf32>
    %162 = arith.mulf %161, %160 : vector<2x1xf32>
    %163 = vector.broadcast %162 : vector<2x1xf32> to vector<2x1024xf32>
    %164 = arith.mulf %163, %10 : vector<2x1024xf32>
    %165 = arith.addf %157, %164 : vector<2x1024xf32>
    %166 = vector.shape_cast %19 : vector<2x1024xf32> to vector<1x2x1024xf32>
    %167 = vector.shape_cast %42 : vector<2x1024xf32> to vector<1x2x1024xf32>
    %168 = vector.shape_cast %74 : vector<2x1024xf32> to vector<1x2x1024xf32>
    %169 = vector.shape_cast %115 : vector<2x1024xf32> to vector<1x2x1024xf32>
    %170 = vector.shape_cast %165 : vector<2x1024xf32> to vector<1x2x1024xf32>
    %171 = tpu.concatenate %166, %167, %168, %169, %170 in 0 : vector<1x2x1024xf32>, vector<1x2x1024xf32>, vector<1x2x1024xf32>, vector<1x2x1024xf32>, vector<1x2x1024xf32> -> vector<5x2x1024xf32>
    %172 = arith.truncf %171 : vector<5x2x1024xf32> to vector<5x2x1024xbf16>
    %c0_50 = arith.constant 0 : index
    %c0_51 = arith.constant 0 : index
    %c0_52 = arith.constant 0 : index
    %173 = vector.load %arg3[%c0_50, %c0_51, %c0_52] : memref<5x2x1024xbf16, #tpu.memory_space<vmem>>, vector<5x2x1024xbf16>
    tpu.vector_store %arg3[%c0_50, %c0_51, %c0_52], %172 {strides = array<i32>} : memref<5x2x1024xbf16, #tpu.memory_space<vmem>>, vector<5x2x1024xbf16>,
    return
  }
  func.func @transform_0(%arg0: i32) -> (i32, i32, i32) {
    %c0_i32 = arith.constant 0 : i32
    %c0_i32_0 = arith.constant 0 : i32
    %c0_i32_1 = arith.constant 0 : i32
    return %arg0, %c0_i32, %c0_i32_0 : i32, i32, i32
  }
  func.func @transform_1(%arg0: i32) -> (i32, i32, i32) {
    %c0_i32 = arith.constant 0 : i32
    %c0_i32_0 = arith.constant 0 : i32
    %c0_i32_1 = arith.constant 0 : i32
    return %c0_i32, %arg0, %c0_i32_0 : i32, i32, i32
  }
  func.func @transform_2(%arg0: i32) -> (i32, i32, i32) {
    %c0_i32 = arith.constant 0 : i32
    %c0_i32_0 = arith.constant 0 : i32
    %c0_i32_1 = arith.constant 0 : i32
    return %c0_i32, %arg0, %c0_i32_0 : i32, i32, i32
  }
}

</mosaic_0001>

<llo_original>
// kernel: tpu_custom_call.1
$region0: #{tpu_custom_call.1}
  #allocation0 [shape = 'u32[]', space=smem, size = 0x4, offset = 0x4, fixed_abs, tag = 'smem constant byte address 0x4 - core index']
  #allocation1 [shape = 'u32[72,128]{1,0:T(1,128)}', space=vmem, size = 0x9000, scoped, tag = 'internal scratch']
  %s0 = inlined_call_operand.vmem [shape: f32[2,5,1024], index: 0, kind: input, shape index: {}]
  %s1 = inlined_call_operand.vmem [shape: f32[5,2,1024], index: 1, kind: input, shape index: {}]
  %s2 = inlined_call_operand.hbm [shape: bf16[5,2,1024], index: 2, kind: output, shape index: {}]
  %s3 = sld [smem:[#allocation0]]
  $region18: #{tpu_custom_call.1} parent=0
    _
  %s5 = ssub.s32 1, %s3
  %s6 = scalar_select 0, %s5, %s3
  $region1: #{tpu_custom_call.1} parent=0
    #allocation2 [shape = 'u8[20480]{0}', space=vmem, size = 0x5000, scoped, tag = 'output window, operand 0, single buffered']
    #allocation3 [shape = 's32[1]{0}', space=sflag, size = 0x4, scoped, tag = 'scoped memory for tpu_custom_call.1']
    %7 = vsyncpa [#allocation3], 0
    // Predicated region
    $region2: #{tpu_custom_call.1} parent=1 // pred_check
      _
    $region3: #{tpu_custom_call.1} parent=1 // pred_check_branch
      %9 = sbr.rel (0) target = $region5
    $region4: #{tpu_custom_call.1} parent=1 // pred_region
      _
    $region5: #{tpu_custom_call.1} parent=1 // pred_fallthru
      _
    // Predicated region
    $region6: #{tpu_custom_call.1} parent=1 // pred_check
      _
    $region7: #{tpu_custom_call.1} parent=1 // pred_check_branch
      %11 = sbr.rel (0) target = $region9
    $region8: #{tpu_custom_call.1} parent=1 // pred_region
      _
    $region9: #{tpu_custom_call.1} parent=1 // pred_fallthru
      _
    %v12 = vld [vmem:[%s0] sm:$0x1f]
    %v13 = vld [vmem:[%s0 + $0x8] sm:$0x1f]
    %v14 = vld [vmem:[%s0 + $0x10] sm:$0x1f]
    %v15 = vld [vmem:[%s0 + $0x18] sm:$0x1f]
    %v16 = vld [vmem:[%s0 + $0x20] sm:$0x1f]
    %v17 = vld [vmem:[%s0 + $0x28] sm:$0x1f]
    %v18 = vld [vmem:[%s0 + $0x30] sm:$0x1f]
    %v19 = vld [vmem:[%s0 + $0x38] sm:$0x1f]
    %v20 = vld [vmem:[%s0 + $0x40] sm:$0x1f]
    %v21 = vld [vmem:[%s0 + $0x48] sm:$0x1f]
    %v22 = vld [vmem:[%s0 + $0x50] sm:$0x1f]
    %v23 = vld [vmem:[%s0 + $0x58] sm:$0x1f]
    %v24 = vld [vmem:[%s0 + $0x60] sm:$0x1f]
    %v25 = vld [vmem:[%s0 + $0x68] sm:$0x1f]
    %v26 = vld [vmem:[%s0 + $0x70] sm:$0x1f]
    %v27 = vld [vmem:[%s0 + $0x78] sm:$0x1f]
    %v28 = vld [vmem:[%s1] sm:$0xff]
    %v29 = vld [vmem:[%s1 + $0x8] sm:$0xff]
    %32 = vst [vmem:[#allocation1] ss:$4 sm:$0xff] %v28
    %s33 = scalar_lea.vmem [#allocation1], 32
    %34 = vst [vmem:[%s33] ss:$4 sm:$0xff] %v29
    %v35 = vld.sshfl [vmem:[#allocation1] sm:$0xff pattern:$0x73625140]
    %v36 = vld.sshfl [vmem:[#allocation1 + $0x8] sm:$0xff pattern:$0x73625140]
    %v37 = vld.sshfl [vmem:[#allocation1 + $0x10] sm:$0xff pattern:$0x73625140]
    %v38 = vld.sshfl [vmem:[#allocation1 + $0x18] sm:$0xff pattern:$0x73625140]
    %v39 = vld.sshfl [vmem:[#allocation1 + $0x20] sm:$0xff pattern:$0x73625140]
    %v40 = vld.sshfl [vmem:[#allocation1 + $0x28] sm:$0xff pattern:$0x73625140]
    %v41 = vld.sshfl [vmem:[#allocation1 + $0x30] sm:$0xff pattern:$0x73625140]
    %v42 = vld.sshfl [vmem:[#allocation1 + $0x38] sm:$0xff pattern:$0x73625140]
    %v43 = vrot.slane %v35, 1
    %v44 = vrot.slane %v36, 1
    %v45 = vrot.slane %v37, 1
    %v46 = vrot.slane %v38, 1
    %v47 = vrot.slane %v39, 1
    %v48 = vrot.slane %v40, 1
    %v49 = vrot.slane %v41, 1
    %v50 = vrot.slane %v42, 1
    %v67 = vmul.f32 %v12, %v35
    %v68 = vmul.f32 %v13, %v36
    %v69 = vmul.f32 %v14, %v37
    %v70 = vmul.f32 %v15, %v38
    %v71 = vmul.f32 %v16, %v39
    %v72 = vmul.f32 %v17, %v40
    %v73 = vmul.f32 %v18, %v41
    %v74 = vmul.f32 %v19, %v42
    %v75 = vmul.f32 %v20, %v43
    %v76 = vmul.f32 %v21, %v44
    %v77 = vmul.f32 %v22, %v45
    %v78 = vmul.f32 %v23, %v46
    %v79 = vmul.f32 %v24, %v47
    %v80 = vmul.f32 %v25, %v48
    %v81 = vmul.f32 %v26, %v49
    %v82 = vmul.f32 %v27, %v50
    %v99 = vrot.slane %v75, 7
    %vm100 = vcmask 1041409
    %v101 = vsel %vm100, %v99, %v67
    %v102 = vrot.slane %v76, 7
    %v103 = vsel %vm100, %v102, %v68
    %v104 = vrot.slane %v77, 7
    %v105 = vsel %vm100, %v104, %v69
    %v106 = vrot.slane %v78, 7
    %v107 = vsel %vm100, %v106, %v70
    %v108 = vrot.slane %v79, 7
    %v109 = vsel %vm100, %v108, %v71
    %v110 = vrot.slane %v80, 7
    %v111 = vsel %vm100, %v110, %v72
    %v112 = vrot.slane %v81, 7
    %v113 = vsel %vm100, %v112, %v73
    %v114 = vrot.slane %v82, 7
    %v115 = vsel %vm100, %v114, %v74
    %vm124 = vcmask 1041408
    %v125 = vsel %vm124, %v101, 0.0
    %v126 = vsel %vm124, %v103, 0.0
    %v127 = vadd.f32 %v125, %v126
    %v128 = vsel %vm124, %v105, 0.0
    %v129 = vadd.f32 %v127, %v128
    %v130 = vsel %vm124, %v107, 0.0
    %v131 = vadd.f32 %v129, %v130
    %v132 = vsel %vm124, %v109, 0.0
    %v133 = vadd.f32 %v131, %v132
    %v134 = vsel %vm124, %v111, 0.0
    %v135 = vadd.f32 %v133, %v134
    %v136 = vsel %vm124, %v113, 0.0
    %v137 = vadd.f32 %v135, %v136
    %v138 = vsel %vm124, %v115, 0.0
    %v139 = vadd.f32 %v137, %v138
    %140 = vadd.xlane.f32.xlu0 %v139
    %v141 = vpop.xlane.xlu0 %140
    %v142 = vmul.f32 %v141, 0.01
    %v159 = vrot.slane %v20, 7
    %v160 = vsel %vm100, %v159, %v12
    %v161 = vrot.slane %v21, 7
    %v162 = vsel %vm100, %v161, %v13
    %v163 = vrot.slane %v22, 7
    %v164 = vsel %vm100, %v163, %v14
    %v165 = vrot.slane %v23, 7
    %v166 = vsel %vm100, %v165, %v15
    %v167 = vrot.slane %v24, 7
    %v168 = vsel %vm100, %v167, %v16
    %v169 = vrot.slane %v25, 7
    %v170 = vsel %vm100, %v169, %v17
    %v171 = vrot.slane %v26, 7
    %v172 = vsel %vm100, %v171, %v18
    %v173 = vrot.slane %v27, 7
    %v174 = vsel %vm100, %v173, %v19
    %v183 = vmul.f32 %v142, %v160
    %v184 = vmul.f32 %v142, %v162
    %v185 = vmul.f32 %v142, %v164
    %v186 = vmul.f32 %v142, %v166
    %v187 = vmul.f32 %v142, %v168
    %v188 = vmul.f32 %v142, %v170
    %v189 = vmul.f32 %v142, %v172
    %v190 = vmul.f32 %v142, %v174
    %s191 = scalar_lea.vmem %s1, 16
    %v192 = vld [vmem:[%s191] sm:$0xff]
    %v193 = vld [vmem:[%s191 + $0x8] sm:$0xff]
    %v194 = vmul.f32 %v12, %v12
    %v195 = vmul.f32 %v13, %v13
    %v196 = vmul.f32 %v14, %v14
    %v197 = vmul.f32 %v15, %v15
    %v198 = vmul.f32 %v16, %v16
    %v199 = vmul.f32 %v17, %v17
    %v200 = vmul.f32 %v18, %v18
    %v201 = vmul.f32 %v19, %v19
    %v202 = vmul.f32 %v20, %v20
    %v203 = vmul.f32 %v21, %v21
    %v204 = vmul.f32 %v22, %v22
    %v205 = vmul.f32 %v23, %v23
    %v206 = vmul.f32 %v24, %v24
    %v207 = vmul.f32 %v25, %v25
    %v208 = vmul.f32 %v26, %v26
    %v209 = vmul.f32 %v27, %v27
    %v210 = vmul.f32 %v194, 0.01
    %v211 = vmul.f32 %v195, 0.01
    %v212 = vmul.f32 %v196, 0.01
    %v213 = vmul.f32 %v197, 0.01
    %v214 = vmul.f32 %v198, 0.01
    %v215 = vmul.f32 %v199, 0.01
    %v216 = vmul.f32 %v200, 0.01
    %v217 = vmul.f32 %v201, 0.01
    %v218 = vmul.f32 %v202, 0.01
    %v219 = vmul.f32 %v203, 0.01
    %v220 = vmul.f32 %v204, 0.01
    %v221 = vmul.f32 %v205, 0.01
    %v222 = vmul.f32 %v206, 0.01
    %v223 = vmul.f32 %v207, 0.01
    %v224 = vmul.f32 %v208, 0.01
    %v225 = vmul.f32 %v209, 0.01
    %v226 = vsub.f32 1.0, %v210
    %v227 = vsub.f32 1.0, %v211
    %v228 = vsub.f32 1.0, %v212
    %v229 = vsub.f32 1.0, %v213
    %v230 = vsub.f32 1.0, %v214
    %v231 = vsub.f32 1.0, %v215
    %v232 = vsub.f32 1.0, %v216
    %v233 = vsub.f32 1.0, %v217
    %v234 = vsub.f32 1.0, %v218
    %v235 = vsub.f32 1.0, %v219
    %v236 = vsub.f32 1.0, %v220
    %v237 = vsub.f32 1.0, %v221
    %v238 = vsub.f32 1.0, %v222
    %v239 = vsub.f32 1.0, %v223
    %v240 = vsub.f32 1.0, %v224
    %v241 = vsub.f32 1.0, %v225
    %v258 = vrot.slane %v226, 1
    %v259 = vrot.slane %v227, 1
    %v260 = vrot.slane %v228, 1
    %v261 = vrot.slane %v229, 1
    %v262 = vrot.slane %v230, 1
    %v263 = vrot.slane %v231, 1
    %v264 = vrot.slane %v232, 1
    %v265 = vrot.slane %v233, 1
    %v266 = vrot.slane %v234, 1
    %v267 = vrot.slane %v235, 1
    %v268 = vrot.slane %v236, 1
    %v269 = vrot.slane %v237, 1
    %v270 = vrot.slane %v238, 1
    %v271 = vrot.slane %v239, 1
    %v272 = vrot.slane %v240, 1
    %v273 = vrot.slane %v241, 1
    %v290 = vmul.f32 %v12, %v258
    %v291 = vmul.f32 %v13, %v259
    %v292 = vmul.f32 %v14, %v260
    %v293 = vmul.f32 %v15, %v261
    %v294 = vmul.f32 %v16, %v262
    %v295 = vmul.f32 %v17, %v263
    %v296 = vmul.f32 %v18, %v264
    %v297 = vmul.f32 %v19, %v265
    %v298 = vmul.f32 %v20, %v266
    %v299 = vmul.f32 %v21, %v267
    %v300 = vmul.f32 %v22, %v268
    %v301 = vmul.f32 %v23, %v269
    %v302 = vmul.f32 %v24, %v270
    %v303 = vmul.f32 %v25, %v271
    %v304 = vmul.f32 %v26, %v272
    %v305 = vmul.f32 %v27, %v273
    %308 = vst [vmem:[#allocation1] ss:$4 sm:$0xff] %v192
    %s309 = scalar_lea.vmem [#allocation1], 32
    %310 = vst [vmem:[%s309] ss:$4 sm:$0xff] %v193
    %v311 = vld.sshfl [vmem:[#allocation1] sm:$0xff pattern:$0x73625140]
    %v312 = vld.sshfl [vmem:[#allocation1 + $0x8] sm:$0xff pattern:$0x73625140]
    %v313 = vld.sshfl [vmem:[#allocation1 + $0x10] sm:$0xff pattern:$0x73625140]
    %v314 = vld.sshfl [vmem:[#allocation1 + $0x18] sm:$0xff pattern:$0x73625140]
    %v315 = vld.sshfl [vmem:[#allocation1 + $0x20] sm:$0xff pattern:$0x73625140]
    %v316 = vld.sshfl [vmem:[#allocation1 + $0x28] sm:$0xff pattern:$0x73625140]
    %v317 = vld.sshfl [vmem:[#allocation1 + $0x30] sm:$0xff pattern:$0x73625140]
    %v318 = vld.sshfl [vmem:[#allocation1 + $0x38] sm:$0xff pattern:$0x73625140]
    %v319 = vrot.slane %v311, 1
    %v320 = vrot.slane %v312, 1
    %v321 = vrot.slane %v313, 1
    %v322 = vrot.slane %v314, 1
    %v323 = vrot.slane %v315, 1
    %v324 = vrot.slane %v316, 1
    %v325 = vrot.slane %v317, 1
    %v326 = vrot.slane %v318, 1
    %v343 = vmul.f32 %v12, %v311
    %v344 = vmul.f32 %v13, %v312
    %v345 = vmul.f32 %v14, %v313
    %v346 = vmul.f32 %v15, %v314
    %v347 = vmul.f32 %v16, %v315
    %v348 = vmul.f32 %v17, %v316
    %v349 = vmul.f32 %v18, %v317
    %v350 = vmul.f32 %v19, %v318
    %v351 = vmul.f32 %v20, %v319
    %v352 = vmul.f32 %v21, %v320
    %v353 = vmul.f32 %v22, %v321
    %v354 = vmul.f32 %v23, %v322
    %v355 = vmul.f32 %v24, %v323
    %v356 = vmul.f32 %v25, %v324
    %v357 = vmul.f32 %v26, %v325
    %v358 = vmul.f32 %v27, %v326
    %v375 = vrot.slane %v351, 7
    %v376 = vsel %vm100, %v375, %v343
    %v377 = vrot.slane %v352, 7
    %v378 = vsel %vm100, %v377, %v344
    %v379 = vrot.slane %v353, 7
    %v380 = vsel %vm100, %v379, %v345
    %v381 = vrot.slane %v354, 7
    %v382 = vsel %vm100, %v381, %v346
    %v383 = vrot.slane %v355, 7
    %v384 = vsel %vm100, %v383, %v347
    %v385 = vrot.slane %v356, 7
    %v386 = vsel %vm100, %v385, %v348
    %v387 = vrot.slane %v357, 7
    %v388 = vsel %vm100, %v387, %v349
    %v389 = vrot.slane %v358, 7
    %v390 = vsel %vm100, %v389, %v350
    %v399 = vsel %vm124, %v376, 0.0
    %v400 = vsel %vm124, %v378, 0.0
    %v401 = vadd.f32 %v399, %v400
    %v402 = vsel %vm124, %v380, 0.0
    %v403 = vadd.f32 %v401, %v402
    %v404 = vsel %vm124, %v382, 0.0
    %v405 = vadd.f32 %v403, %v404
    %v406 = vsel %vm124, %v384, 0.0
    %v407 = vadd.f32 %v405, %v406
    %v408 = vsel %vm124, %v386, 0.0
    %v409 = vadd.f32 %v407, %v408
    %v410 = vsel %vm124, %v388, 0.0
    %v411 = vadd.f32 %v409, %v410
    %v412 = vsel %vm124, %v390, 0.0
    %v413 = vadd.f32 %v411, %v412
    %414 = vadd.xlane.f32.xlu0 %v413
    %v415 = vpop.xlane.xlu0 %414
    %v416 = vmul.f32 %v415, 0.01
    %v433 = vrot.slane %v298, 7
    %v434 = vsel %vm100, %v433, %v290
    %v435 = vrot.slane %v299, 7
    %v436 = vsel %vm100, %v435, %v291
    %v437 = vrot.slane %v300, 7
    %v438 = vsel %vm100, %v437, %v292
    %v439 = vrot.slane %v301, 7
    %v440 = vsel %vm100, %v439, %v293
    %v441 = vrot.slane %v302, 7
    %v442 = vsel %vm100, %v441, %v294
    %v443 = vrot.slane %v303, 7
    %v444 = vsel %vm100, %v443, %v295
    %v445 = vrot.slane %v304, 7
    %v446 = vsel %vm100, %v445, %v296
    %v447 = vrot.slane %v305, 7
    %v448 = vsel %vm100, %v447, %v297
    %v457 = vmul.f32 %v416, %v434
    %v458 = vmul.f32 %v416, %v436
    %v459 = vmul.f32 %v416, %v438
    %v460 = vmul.f32 %v416, %v440
    %v461 = vmul.f32 %v416, %v442
    %v462 = vmul.f32 %v416, %v444
    %v463 = vmul.f32 %v416, %v446
    %v464 = vmul.f32 %v416, %v448
    %465 = vst [vmem:[#allocation1] ss:$4 sm:$0xff] %v192
    %s466 = scalar_lea.vmem [#allocation1], 32
    %467 = vst [vmem:[%s466] ss:$4 sm:$0xff] %v193
    %v468 = vld.sshfl [vmem:[#allocation1] sm:$0xff pattern:$0x73625140]
    %v469 = vld.sshfl [vmem:[#allocation1 + $0x8] sm:$0xff pattern:$0x73625140]
    %v470 = vld.sshfl [vmem:[#allocation1 + $0x10] sm:$0xff pattern:$0x73625140]
    %v471 = vld.sshfl [vmem:[#allocation1 + $0x18] sm:$0xff pattern:$0x73625140]
    %v472 = vld.sshfl [vmem:[#allocation1 + $0x20] sm:$0xff pattern:$0x73625140]
    %v473 = vld.sshfl [vmem:[#allocation1 + $0x28] sm:$0xff pattern:$0x73625140]
    %v474 = vld.sshfl [vmem:[#allocation1 + $0x30] sm:$0xff pattern:$0x73625140]
    %v475 = vld.sshfl [vmem:[#allocation1 + $0x38] sm:$0xff pattern:$0x73625140]
    %v476 = vrot.slane %v468, 7
    %v477 = vrot.slane %v469, 7
    %v478 = vrot.slane %v470, 7
    %v479 = vrot.slane %v471, 7
    %v480 = vrot.slane %v472, 7
    %v481 = vrot.slane %v473, 7
    %v482 = vrot.slane %v474, 7
    %v483 = vrot.slane %v475, 7
    %v500 = vmul.f32 %v12, %v476
    %v501 = vmul.f32 %v13, %v477
    %v502 = vmul.f32 %v14, %v478
    %v503 = vmul.f32 %v15, %v479
    %v504 = vmul.f32 %v16, %v480
    %v505 = vmul.f32 %v17, %v481
    %v506 = vmul.f32 %v18, %v482
    %v507 = vmul.f32 %v19, %v483
    %v508 = vmul.f32 %v20, %v468
    %v509 = vmul.f32 %v21, %v469
    %v510 = vmul.f32 %v22, %v470
    %v511 = vmul.f32 %v23, %v471
    %v512 = vmul.f32 %v24, %v472
    %v513 = vmul.f32 %v25, %v473
    %v514 = vmul.f32 %v26, %v474
    %v515 = vmul.f32 %v27, %v475
    %v532 = vrot.slane %v508, 7
    %vm533 = vcmask 1042434
    %v534 = vsel %vm533, %v532, %v500
    %v535 = vrot.slane %v509, 7
    %v536 = vsel %vm533, %v535, %v501
    %v537 = vrot.slane %v510, 7
    %v538 = vsel %vm533, %v537, %v502
    %v539 = vrot.slane %v511, 7
    %v540 = vsel %vm533, %v539, %v503
    %v541 = vrot.slane %v512, 7
    %v542 = vsel %vm533, %v541, %v504
    %v543 = vrot.slane %v513, 7
    %v544 = vsel %vm533, %v543, %v505
    %v545 = vrot.slane %v514, 7
    %v546 = vsel %vm533, %v545, %v506
    %v547 = vrot.slane %v515, 7
    %v548 = vsel %vm533, %v547, %v507
    %vm557 = vcmask 1042433
    %v558 = vsel %vm557, %v534, 0.0
    %v559 = vsel %vm557, %v536, 0.0
    %v560 = vadd.f32 %v558, %v559
    %v561 = vsel %vm557, %v538, 0.0
    %v562 = vadd.f32 %v560, %v561
    %v563 = vsel %vm557, %v540, 0.0
    %v564 = vadd.f32 %v562, %v563
    %v565 = vsel %vm557, %v542, 0.0
    %v566 = vadd.f32 %v564, %v565
    %v567 = vsel %vm557, %v544, 0.0
    %v568 = vadd.f32 %v566, %v567
    %v569 = vsel %vm557, %v546, 0.0
    %v570 = vadd.f32 %v568, %v569
    %v571 = vsel %vm557, %v548, 0.0
    %v572 = vadd.f32 %v570, %v571
    %573 = vadd.xlane.f32.xlu0 %v572
    %v574 = vpop.xlane.xlu0 %573
    %v575 = vmul.f32 %v574, 0.01
    %v576 = vsel %vm533, %v159, %v12
    %v577 = vsel %vm533, %v161, %v13
    %v578 = vsel %vm533, %v163, %v14
    %v579 = vsel %vm533, %v165, %v15
    %v580 = vsel %vm533, %v167, %v16
    %v581 = vsel %vm533, %v169, %v17
    %v582 = vsel %vm533, %v171, %v18
    %v583 = vsel %vm533, %v173, %v19
    %v592 = vmul.f32 %v575, %v576
    %v593 = vmul.f32 %v575, %v577
    %v594 = vmul.f32 %v575, %v578
    %v595 = vmul.f32 %v575, %v579
    %v596 = vmul.f32 %v575, %v580
    %v597 = vmul.f32 %v575, %v581
    %v598 = vmul.f32 %v575, %v582
    %v599 = vmul.f32 %v575, %v583
    %v608 = vrot.slane %v592, 1
    %v609 = vrot.slane %v593, 1
    %v610 = vrot.slane %v594, 1
    %v611 = vrot.slane %v595, 1
    %v612 = vrot.slane %v596, 1
    %v613 = vrot.slane %v597, 1
    %v614 = vrot.slane %v598, 1
    %v615 = vrot.slane %v599, 1
    %v624 = vadd.f32 %v457, %v608
    %v625 = vadd.f32 %v458, %v609
    %v626 = vadd.f32 %v459, %v610
    %v627 = vadd.f32 %v460, %v611
    %v628 = vadd.f32 %v461, %v612
    %v629 = vadd.f32 %v462, %v613
    %v630 = vadd.f32 %v463, %v614
    %v631 = vadd.f32 %v464, %v615
    %s632 = scalar_lea.vmem %s1, 32
    %v633 = vld [vmem:[%s632] sm:$0xff]
    %v634 = vld [vmem:[%s632 + $0x8] sm:$0xff]
    %v635 = vrot.slane %v226, 2
    %v636 = vrot.slane %v227, 2
    %v637 = vrot.slane %v228, 2
    %v638 = vrot.slane %v229, 2
    %v639 = vrot.slane %v230, 2
    %v640 = vrot.slane %v231, 2
    %v641 = vrot.slane %v232, 2
    %v642 = vrot.slane %v233, 2
    %v643 = vrot.slane %v234, 2
    %v644 = vrot.slane %v235, 2
    %v645 = vrot.slane %v236, 2
    %v646 = vrot.slane %v237, 2
    %v647 = vrot.slane %v238, 2
    %v648 = vrot.slane %v239, 2
    %v649 = vrot.slane %v240, 2
    %v650 = vrot.slane %v241, 2
    %v667 = vmul.f32 %v290, %v635
    %v668 = vmul.f32 %v291, %v636
    %v669 = vmul.f32 %v292, %v637
    %v670 = vmul.f32 %v293, %v638
    %v671 = vmul.f32 %v294, %v639
    %v672 = vmul.f32 %v295, %v640
    %v673 = vmul.f32 %v296, %v641
    %v674 = vmul.f32 %v297, %v642
    %v675 = vmul.f32 %v298, %v643
    %v676 = vmul.f32 %v299, %v644
    %v677 = vmul.f32 %v300, %v645
    %v678 = vmul.f32 %v301, %v646
    %v679 = vmul.f32 %v302, %v647
    %v680 = vmul.f32 %v303, %v648
    %v681 = vmul.f32 %v304, %v649
    %v682 = vmul.f32 %v305, %v650
    %685 = vst [vmem:[#allocation1] ss:$4 sm:$0xff] %v633
    %s686 = scalar_lea.vmem [#allocation1], 32
    %687 = vst [vmem:[%s686] ss:$4 sm:$0xff] %v634
    %v688 = vld.sshfl [vmem:[#allocation1] sm:$0xff pattern:$0x73625140]
    %v689 = vld.sshfl [vmem:[#allocation1 + $0x8] sm:$0xff pattern:$0x73625140]
    %v690 = vld.sshfl [vmem:[#allocation1 + $0x10] sm:$0xff pattern:$0x73625140]
    %v691 = vld.sshfl [vmem:[#allocation1 + $0x18] sm:$0xff pattern:$0x73625140]
    %v692 = vld.sshfl [vmem:[#allocation1 + $0x20] sm:$0xff pattern:$0x73625140]
    %v693 = vld.sshfl [vmem:[#allocation1 + $0x28] sm:$0xff pattern:$0x73625140]
    %v694 = vld.sshfl [vmem:[#allocation1 + $0x30] sm:$0xff pattern:$0x73625140]
    %v695 = vld.sshfl [vmem:[#allocation1 + $0x38] sm:$0xff pattern:$0x73625140]
    %v696 = vrot.slane %v688, 1
    %v697 = vrot.slane %v689, 1
    %v698 = vrot.slane %v690, 1
    %v699 = vrot.slane %v691, 1
    %v700 = vrot.slane %v692, 1
    %v701 = vrot.slane %v693, 1
    %v702 = vrot.slane %v694, 1
    %v703 = vrot.slane %v695, 1
    %v720 = vmul.f32 %v12, %v688
    %v721 = vmul.f32 %v13, %v689
    %v722 = vmul.f32 %v14, %v690
    %v723 = vmul.f32 %v15, %v691
    %v724 = vmul.f32 %v16, %v692
    %v725 = vmul.f32 %v17, %v693
    %v726 = vmul.f32 %v18, %v694
    %v727 = vmul.f32 %v19, %v695
    %v728 = vmul.f32 %v20, %v696
    %v729 = vmul.f32 %v21, %v697
    %v730 = vmul.f32 %v22, %v698
    %v731 = vmul.f32 %v23, %v699
    %v732 = vmul.f32 %v24, %v700
    %v733 = vmul.f32 %v25, %v701
    %v734 = vmul.f32 %v26, %v702
    %v735 = vmul.f32 %v27, %v703
    %v752 = vrot.slane %v728, 7
    %v753 = vsel %vm100, %v752, %v720
    %v754 = vrot.slane %v729, 7
    %v755 = vsel %vm100, %v754, %v721
    %v756 = vrot.slane %v730, 7
    %v757 = vsel %vm100, %v756, %v722
    %v758 = vrot.slane %v731, 7
    %v759 = vsel %vm100, %v758, %v723
    %v760 = vrot.slane %v732, 7
    %v761 = vsel %vm100, %v760, %v724
    %v762 = vrot.slane %v733, 7
    %v763 = vsel %vm100, %v762, %v725
    %v764 = vrot.slane %v734, 7
    %v765 = vsel %vm100, %v764, %v726
    %v766 = vrot.slane %v735, 7
    %v767 = vsel %vm100, %v766, %v727
    %v776 = vsel %vm124, %v753, 0.0
    %v777 = vsel %vm124, %v755, 0.0
    %v778 = vadd.f32 %v776, %v777
    %v779 = vsel %vm124, %v757, 0.0
    %v780 = vadd.f32 %v778, %v779
    %v781 = vsel %vm124, %v759, 0.0
    %v782 = vadd.f32 %v780, %v781
    %v783 = vsel %vm124, %v761, 0.0
    %v784 = vadd.f32 %v782, %v783
    %v785 = vsel %vm124, %v763, 0.0
    %v786 = vadd.f32 %v784, %v785
    %v787 = vsel %vm124, %v765, 0.0
    %v788 = vadd.f32 %v786, %v787
    %v789 = vsel %vm124, %v767, 0.0
    %v790 = vadd.f32 %v788, %v789
    %791 = vadd.xlane.f32.xlu0 %v790
    %v792 = vpop.xlane.xlu0 %791
    %v793 = vmul.f32 %v792, 0.01
    %v810 = vrot.slane %v675, 7
    %v811 = vsel %vm100, %v810, %v667
    %v812 = vrot.slane %v676, 7
    %v813 = vsel %vm100, %v812, %v668
    %v814 = vrot.slane %v677, 7
    %v815 = vsel %vm100, %v814, %v669
    %v816 = vrot.slane %v678, 7
    %v817 = vsel %vm100, %v816, %v670
    %v818 = vrot.slane %v679, 7
    %v819 = vsel %vm100, %v818, %v671
    %v820 = vrot.slane %v680, 7
    %v821 = vsel %vm100, %v820, %v672
    %v822 = vrot.slane %v681, 7
    %v823 = vsel %vm100, %v822, %v673
    %v824 = vrot.slane %v682, 7
    %v825 = vsel %vm100, %v824, %v674
    %v834 = vmul.f32 %v793, %v811
    %v835 = vmul.f32 %v793, %v813
    %v836 = vmul.f32 %v793, %v815
    %v837 = vmul.f32 %v793, %v817
    %v838 = vmul.f32 %v793, %v819
    %v839 = vmul.f32 %v793, %v821
    %v840 = vmul.f32 %v793, %v823
    %v841 = vmul.f32 %v793, %v825
    %842 = vst [vmem:[#allocation1] ss:$4 sm:$0xff] %v633
    %s843 = scalar_lea.vmem [#allocation1], 32
    %844 = vst [vmem:[%s843] ss:$4 sm:$0xff] %v634
    %v845 = vld.sshfl [vmem:[#allocation1] sm:$0xff pattern:$0x73625140]
    %v846 = vld.sshfl [vmem:[#allocation1 + $0x8] sm:$0xff pattern:$0x73625140]
    %v847 = vld.sshfl [vmem:[#allocation1 + $0x10] sm:$0xff pattern:$0x73625140]
    %v848 = vld.sshfl [vmem:[#allocation1 + $0x18] sm:$0xff pattern:$0x73625140]
    %v849 = vld.sshfl [vmem:[#allocation1 + $0x20] sm:$0xff pattern:$0x73625140]
    %v850 = vld.sshfl [vmem:[#allocation1 + $0x28] sm:$0xff pattern:$0x73625140]
    %v851 = vld.sshfl [vmem:[#allocation1 + $0x30] sm:$0xff pattern:$0x73625140]
    %v852 = vld.sshfl [vmem:[#allocation1 + $0x38] sm:$0xff pattern:$0x73625140]
    %v853 = vrot.slane %v845, 7
    %v854 = vrot.slane %v846, 7
    %v855 = vrot.slane %v847, 7
    %v856 = vrot.slane %v848, 7
    %v857 = vrot.slane %v849, 7
    %v858 = vrot.slane %v850, 7
    %v859 = vrot.slane %v851, 7
    %v860 = vrot.slane %v852, 7
    %v877 = vmul.f32 %v12, %v853
    %v878 = vmul.f32 %v13, %v854
    %v879 = vmul.f32 %v14, %v855
    %v880 = vmul.f32 %v15, %v856
    %v881 = vmul.f32 %v16, %v857
    %v882 = vmul.f32 %v17, %v858
    %v883 = vmul.f32 %v18, %v859
    %v884 = vmul.f32 %v19, %v860
    %v885 = vmul.f32 %v20, %v845
    %v886 = vmul.f32 %v21, %v846
    %v887 = vmul.f32 %v22, %v847
    %v888 = vmul.f32 %v23, %v848
    %v889 = vmul.f32 %v24, %v849
    %v890 = vmul.f32 %v25, %v850
    %v891 = vmul.f32 %v26, %v851
    %v892 = vmul.f32 %v27, %v852
    %v909 = vrot.slane %v885, 7
    %v910 = vsel %vm533, %v909, %v877
    %v911 = vrot.slane %v886, 7
    %v912 = vsel %vm533, %v911, %v878
    %v913 = vrot.slane %v887, 7
    %v914 = vsel %vm533, %v913, %v879
    %v915 = vrot.slane %v888, 7
    %v916 = vsel %vm533, %v915, %v880
    %v917 = vrot.slane %v889, 7
    %v918 = vsel %vm533, %v917, %v881
    %v919 = vrot.slane %v890, 7
    %v920 = vsel %vm533, %v919, %v882
    %v921 = vrot.slane %v891, 7
    %v922 = vsel %vm533, %v921, %v883
    %v923 = vrot.slane %v892, 7
    %v924 = vsel %vm533, %v923, %v884
    %v933 = vsel %vm557, %v910, 0.0
    %v934 = vsel %vm557, %v912, 0.0
    %v935 = vadd.f32 %v933, %v934
    %v936 = vsel %vm557, %v914, 0.0
    %v937 = vadd.f32 %v935, %v936
    %v938 = vsel %vm557, %v916, 0.0
    %v939 = vadd.f32 %v937, %v938
    %v940 = vsel %vm557, %v918, 0.0
    %v941 = vadd.f32 %v939, %v940
    %v942 = vsel %vm557, %v920, 0.0
    %v943 = vadd.f32 %v941, %v942
    %v944 = vsel %vm557, %v922, 0.0
    %v945 = vadd.f32 %v943, %v944
    %v946 = vsel %vm557, %v924, 0.0
    %v947 = vadd.f32 %v945, %v946
    %948 = vadd.xlane.f32.xlu0 %v947
    %v949 = vpop.xlane.xlu0 %948
    %v950 = vmul.f32 %v949, 0.01
    %v951 = vsel %vm533, %v433, %v290
    %v952 = vsel %vm533, %v435, %v291
    %v953 = vsel %vm533, %v437, %v292
    %v954 = vsel %vm533, %v439, %v293
    %v955 = vsel %vm533, %v441, %v294
    %v956 = vsel %vm533, %v443, %v295
    %v957 = vsel %vm533, %v445, %v296
    %v958 = vsel %vm533, %v447, %v297
    %v967 = vmul.f32 %v950, %v951
    %v968 = vmul.f32 %v950, %v952
    %v969 = vmul.f32 %v950, %v953
    %v970 = vmul.f32 %v950, %v954
    %v971 = vmul.f32 %v950, %v955
    %v972 = vmul.f32 %v950, %v956
    %v973 = vmul.f32 %v950, %v957
    %v974 = vmul.f32 %v950, %v958
    %v983 = vrot.slane %v967, 1
    %v984 = vrot.slane %v968, 1
    %v985 = vrot.slane %v969, 1
    %v986 = vrot.slane %v970, 1
    %v987 = vrot.slane %v971, 1
    %v988 = vrot.slane %v972, 1
    %v989 = vrot.slane %v973, 1
    %v990 = vrot.slane %v974, 1
    %v999 = vadd.f32 %v834, %v983
    %v1000 = vadd.f32 %v835, %v984
    %v1001 = vadd.f32 %v836, %v985
    %v1002 = vadd.f32 %v837, %v986
    %v1003 = vadd.f32 %v838, %v987
    %v1004 = vadd.f32 %v839, %v988
    %v1005 = vadd.f32 %v840, %v989
    %v1006 = vadd.f32 %v841, %v990
    %s1007 = scalar_lea.vmem [#allocation1], 1
    %1008 = vst [vmem:[%s1007] ss:$4 sm:$0xff] %v633
    %s1009 = scalar_lea.vmem [#allocation1], 33
    %1010 = vst [vmem:[%s1009] ss:$4 sm:$0xff] %v634
    %v1011 = vld.sshfl [vmem:[#allocation1] sm:$0xff pattern:$0x73625140]
    %v1012 = vld.sshfl [vmem:[#allocation1 + $0x8] sm:$0xff pattern:$0x73625140]
    %v1013 = vld.sshfl [vmem:[#allocation1 + $0x10] sm:$0xff pattern:$0x73625140]
    %v1014 = vld.sshfl [vmem:[#allocation1 + $0x18] sm:$0xff pattern:$0x73625140]
    %v1015 = vld.sshfl [vmem:[#allocation1 + $0x20] sm:$0xff pattern:$0x73625140]
    %v1016 = vld.sshfl [vmem:[#allocation1 + $0x28] sm:$0xff pattern:$0x73625140]
    %v1017 = vld.sshfl [vmem:[#allocation1 + $0x30] sm:$0xff pattern:$0x73625140]
    %v1018 = vld.sshfl [vmem:[#allocation1 + $0x38] sm:$0xff pattern:$0x73625140]
    %v1019 = vrot.slane %v1011, 1
    %v1020 = vrot.slane %v1012, 1
    %v1021 = vrot.slane %v1013, 1
    %v1022 = vrot.slane %v1014, 1
    %v1023 = vrot.slane %v1015, 1
    %v1024 = vrot.slane %v1016, 1
    %v1025 = vrot.slane %v1017, 1
    %v1026 = vrot.slane %v1018, 1
    %v1043 = vmul.f32 %v12, %v1011
    %v1044 = vmul.f32 %v13, %v1012
    %v1045 = vmul.f32 %v14, %v1013
    %v1046 = vmul.f32 %v15, %v1014
    %v1047 = vmul.f32 %v16, %v1015
    %v1048 = vmul.f32 %v17, %v1016
    %v1049 = vmul.f32 %v18, %v1017
    %v1050 = vmul.f32 %v19, %v1018
    %v1051 = vmul.f32 %v20, %v1019
    %v1052 = vmul.f32 %v21, %v1020
    %v1053 = vmul.f32 %v22, %v1021
    %v1054 = vmul.f32 %v23, %v1022
    %v1055 = vmul.f32 %v24, %v1023
    %v1056 = vmul.f32 %v25, %v1024
    %v1057 = vmul.f32 %v26, %v1025
    %v1058 = vmul.f32 %v27, %v1026
    %v1075 = vrot.slane %v1051, 7
    %vm1076 = vcmask 1043459
    %v1077 = vsel %vm1076, %v1075, %v1043
    %v1078 = vrot.slane %v1052, 7
    %v1079 = vsel %vm1076, %v1078, %v1044
    %v1080 = vrot.slane %v1053, 7
    %v1081 = vsel %vm1076, %v1080, %v1045
    %v1082 = vrot.slane %v1054, 7
    %v1083 = vsel %vm1076, %v1082, %v1046
    %v1084 = vrot.slane %v1055, 7
    %v1085 = vsel %vm1076, %v1084, %v1047
    %v1086 = vrot.slane %v1056, 7
    %v1087 = vsel %vm1076, %v1086, %v1048
    %v1088 = vrot.slane %v1057, 7
    %v1089 = vsel %vm1076, %v1088, %v1049
    %v1090 = vrot.slane %v1058, 7
    %v1091 = vsel %vm1076, %v1090, %v1050
    %vm1100 = vcmask 1043458
    %v1101 = vsel %vm1100, %v1077, 0.0
    %v1102 = vsel %vm1100, %v1079, 0.0
    %v1103 = vadd.f32 %v1101, %v1102
    %v1104 = vsel %vm1100, %v1081, 0.0
    %v1105 = vadd.f32 %v1103, %v1104
    %v1106 = vsel %vm1100, %v1083, 0.0
    %v1107 = vadd.f32 %v1105, %v1106
    %v1108 = vsel %vm1100, %v1085, 0.0
    %v1109 = vadd.f32 %v1107, %v1108
    %v1110 = vsel %vm1100, %v1087, 0.0
    %v1111 = vadd.f32 %v1109, %v1110
    %v1112 = vsel %vm1100, %v1089, 0.0
    %v1113 = vadd.f32 %v1111, %v1112
    %v1114 = vsel %vm1100, %v1091, 0.0
    %v1115 = vadd.f32 %v1113, %v1114
    %1116 = vadd.xlane.f32.xlu0 %v1115
    %v1117 = vpop.xlane.xlu0 %1116
    %v1118 = vmul.f32 %v1117, 0.01
    %v1119 = vsel %vm1076, %v159, %v12
    %v1120 = vsel %vm1076, %v161, %v13
    %v1121 = vsel %vm1076, %v163, %v14
    %v1122 = vsel %vm1076, %v165, %v15
    %v1123 = vsel %vm1076, %v167, %v16
    %v1124 = vsel %vm1076, %v169, %v17
    %v1125 = vsel %vm1076, %v171, %v18
    %v1126 = vsel %vm1076, %v173, %v19
    %v1135 = vmul.f32 %v1118, %v1119
    %v1136 = vmul.f32 %v1118, %v1120
    %v1137 = vmul.f32 %v1118, %v1121
    %v1138 = vmul.f32 %v1118, %v1122
    %v1139 = vmul.f32 %v1118, %v1123
    %v1140 = vmul.f32 %v1118, %v1124
    %v1141 = vmul.f32 %v1118, %v1125
    %v1142 = vmul.f32 %v1118, %v1126
    %v1151 = vrot.slane %v1135, 2
    %v1152 = vrot.slane %v1136, 2
    %v1153 = vrot.slane %v1137, 2
    %v1154 = vrot.slane %v1138, 2
    %v1155 = vrot.slane %v1139, 2
    %v1156 = vrot.slane %v1140, 2
    %v1157 = vrot.slane %v1141, 2
    %v1158 = vrot.slane %v1142, 2
    %v1167 = vadd.f32 %v999, %v1151
    %v1168 = vadd.f32 %v1000, %v1152
    %v1169 = vadd.f32 %v1001, %v1153
    %v1170 = vadd.f32 %v1002, %v1154
    %v1171 = vadd.f32 %v1003, %v1155
    %v1172 = vadd.f32 %v1004, %v1156
    %v1173 = vadd.f32 %v1005, %v1157
    %v1174 = vadd.f32 %v1006, %v1158
    %s1175 = scalar_lea.vmem %s1, 48
    %v1176 = vld [vmem:[%s1175] sm:$0xff]
    %v1177 = vld [vmem:[%s1175 + $0x8] sm:$0xff]
    %v1178 = vrot.slane %v226, 3
    %v1179 = vrot.slane %v227, 3
    %v1180 = vrot.slane %v228, 3
    %v1181 = vrot.slane %v229, 3
    %v1182 = vrot.slane %v230, 3
    %v1183 = vrot.slane %v231, 3
    %v1184 = vrot.slane %v232, 3
    %v1185 = vrot.slane %v233, 3
    %v1186 = vrot.slane %v234, 3
    %v1187 = vrot.slane %v235, 3
    %v1188 = vrot.slane %v236, 3
    %v1189 = vrot.slane %v237, 3
    %v1190 = vrot.slane %v238, 3
    %v1191 = vrot.slane %v239, 3
    %v1192 = vrot.slane %v240, 3
    %v1193 = vrot.slane %v241, 3
    %v1210 = vmul.f32 %v667, %v1178
    %v1211 = vmul.f32 %v668, %v1179
    %v1212 = vmul.f32 %v669, %v1180
    %v1213 = vmul.f32 %v670, %v1181
    %v1214 = vmul.f32 %v671, %v1182
    %v1215 = vmul.f32 %v672, %v1183
    %v1216 = vmul.f32 %v673, %v1184
    %v1217 = vmul.f32 %v674, %v1185
    %v1218 = vmul.f32 %v675, %v1186
    %v1219 = vmul.f32 %v676, %v1187
    %v1220 = vmul.f32 %v677, %v1188
    %v1221 = vmul.f32 %v678, %v1189
    %v1222 = vmul.f32 %v679, %v1190
    %v1223 = vmul.f32 %v680, %v1191
    %v1224 = vmul.f32 %v681, %v1192
    %v1225 = vmul.f32 %v682, %v1193
    %1228 = vst [vmem:[#allocation1] ss:$4 sm:$0xff] %v1176
    %s1229 = scalar_lea.vmem [#allocation1], 32
    %1230 = vst [vmem:[%s1229] ss:$4 sm:$0xff] %v1177
    %v1231 = vld.sshfl [vmem:[#allocation1] sm:$0xff pattern:$0x73625140]
    %v1232 = vld.sshfl [vmem:[#allocation1 + $0x8] sm:$0xff pattern:$0x73625140]
    %v1233 = vld.sshfl [vmem:[#allocation1 + $0x10] sm:$0xff pattern:$0x73625140]
    %v1234 = vld.sshfl [vmem:[#allocation1 + $0x18] sm:$0xff pattern:$0x73625140]
    %v1235 = vld.sshfl [vmem:[#allocation1 + $0x20] sm:$0xff pattern:$0x73625140]
    %v1236 = vld.sshfl [vmem:[#allocation1 + $0x28] sm:$0xff pattern:$0x73625140]
    %v1237 = vld.sshfl [vmem:[#allocation1 + $0x30] sm:$0xff pattern:$0x73625140]
    %v1238 = vld.sshfl [vmem:[#allocation1 + $0x38] sm:$0xff pattern:$0x73625140]
    %v1239 = vrot.slane %v1231, 1
    %v1240 = vrot.slane %v1232, 1
    %v1241 = vrot.slane %v1233, 1
    %v1242 = vrot.slane %v1234, 1
    %v1243 = vrot.slane %v1235, 1
    %v1244 = vrot.slane %v1236, 1
    %v1245 = vrot.slane %v1237, 1
    %v1246 = vrot.slane %v1238, 1
    %v1263 = vmul.f32 %v12, %v1231
    %v1264 = vmul.f32 %v13, %v1232
    %v1265 = vmul.f32 %v14, %v1233
    %v1266 = vmul.f32 %v15, %v1234
    %v1267 = vmul.f32 %v16, %v1235
    %v1268 = vmul.f32 %v17, %v1236
    %v1269 = vmul.f32 %v18, %v1237
    %v1270 = vmul.f32 %v19, %v1238
    %v1271 = vmul.f32 %v20, %v1239
    %v1272 = vmul.f32 %v21, %v1240
    %v1273 = vmul.f32 %v22, %v1241
    %v1274 = vmul.f32 %v23, %v1242
    %v1275 = vmul.f32 %v24, %v1243
    %v1276 = vmul.f32 %v25, %v1244
    %v1277 = vmul.f32 %v26, %v1245
    %v1278 = vmul.f32 %v27, %v1246
    %v1295 = vrot.slane %v1271, 7
    %v1296 = vsel %vm100, %v1295, %v1263
    %v1297 = vrot.slane %v1272, 7
    %v1298 = vsel %vm100, %v1297, %v1264
    %v1299 = vrot.slane %v1273, 7
    %v1300 = vsel %vm100, %v1299, %v1265
    %v1301 = vrot.slane %v1274, 7
    %v1302 = vsel %vm100, %v1301, %v1266
    %v1303 = vrot.slane %v1275, 7
    %v1304 = vsel %vm100, %v1303, %v1267
    %v1305 = vrot.slane %v1276, 7
    %v1306 = vsel %vm100, %v1305, %v1268
    %v1307 = vrot.slane %v1277, 7
    %v1308 = vsel %vm100, %v1307, %v1269
    %v1309 = vrot.slane %v1278, 7
    %v1310 = vsel %vm100, %v1309, %v1270
    %v1319 = vsel %vm124, %v1296, 0.0
    %v1320 = vsel %vm124, %v1298, 0.0
    %v1321 = vadd.f32 %v1319, %v1320
    %v1322 = vsel %vm124, %v1300, 0.0
    %v1323 = vadd.f32 %v1321, %v1322
    %v1324 = vsel %vm124, %v1302, 0.0
    %v1325 = vadd.f32 %v1323, %v1324
    %v1326 = vsel %vm124, %v1304, 0.0
    %v1327 = vadd.f32 %v1325, %v1326
    %v1328 = vsel %vm124, %v1306, 0.0
    %v1329 = vadd.f32 %v1327, %v1328
    %v1330 = vsel %vm124, %v1308, 0.0
    %v1331 = vadd.f32 %v1329, %v1330
    %v1332 = vsel %vm124, %v1310, 0.0
    %v1333 = vadd.f32 %v1331, %v1332
    %1334 = vadd.xlane.f32.xlu0 %v1333
    %v1335 = vpop.xlane.xlu0 %1334
    %v1336 = vmul.f32 %v1335, 0.01
    %v1353 = vrot.slane %v1218, 7
    %v1354 = vsel %vm100, %v1353, %v1210
    %v1355 = vrot.slane %v1219, 7
    %v1356 = vsel %vm100, %v1355, %v1211
    %v1357 = vrot.slane %v1220, 7
    %v1358 = vsel %vm100, %v1357, %v1212
    %v1359 = vrot.slane %v1221, 7
    %v1360 = vsel %vm100, %v1359, %v1213
    %v1361 = vrot.slane %v1222, 7
    %v1362 = vsel %vm100, %v1361, %v1214
    %v1363 = vrot.slane %v1223, 7
    %v1364 = vsel %vm100, %v1363, %v1215
    %v1365 = vrot.slane %v1224, 7
    %v1366 = vsel %vm100, %v1365, %v1216
    %v1367 = vrot.slane %v1225, 7
    %v1368 = vsel %vm100, %v1367, %v1217
    %v1377 = vmul.f32 %v1336, %v1354
    %v1378 = vmul.f32 %v1336, %v1356
    %v1379 = vmul.f32 %v1336, %v1358
    %v1380 = vmul.f32 %v1336, %v1360
    %v1381 = vmul.f32 %v1336, %v1362
    %v1382 = vmul.f32 %v1336, %v1364
    %v1383 = vmul.f32 %v1336, %v1366
    %v1384 = vmul.f32 %v1336, %v1368
    %1385 = vst [vmem:[#allocation1] ss:$4 sm:$0xff] %v1176
    %s1386 = scalar_lea.vmem [#allocation1], 32
    %1387 = vst [vmem:[%s1386] ss:$4 sm:$0xff] %v1177
    %v1388 = vld.sshfl [vmem:[#allocation1] sm:$0xff pattern:$0x73625140]
    %v1389 = vld.sshfl [vmem:[#allocation1 + $0x8] sm:$0xff pattern:$0x73625140]
    %v1390 = vld.sshfl [vmem:[#allocation1 + $0x10] sm:$0xff pattern:$0x73625140]
    %v1391 = vld.sshfl [vmem:[#allocation1 + $0x18] sm:$0xff pattern:$0x73625140]
    %v1392 = vld.sshfl [vmem:[#allocation1 + $0x20] sm:$0xff pattern:$0x73625140]
    %v1393 = vld.sshfl [vmem:[#allocation1 + $0x28] sm:$0xff pattern:$0x73625140]
    %v1394 = vld.sshfl [vmem:[#allocation1 + $0x30] sm:$0xff pattern:$0x73625140]
    %v1395 = vld.sshfl [vmem:[#allocation1 + $0x38] sm:$0xff pattern:$0x73625140]
    %v1396 = vrot.slane %v1388, 7
    %v1397 = vrot.slane %v1389, 7
    %v1398 = vrot.slane %v1390, 7
    %v1399 = vrot.slane %v1391, 7
    %v1400 = vrot.slane %v1392, 7
    %v1401 = vrot.slane %v1393, 7
    %v1402 = vrot.slane %v1394, 7
    %v1403 = vrot.slane %v1395, 7
    %v1420 = vmul.f32 %v12, %v1396
    %v1421 = vmul.f32 %v13, %v1397
    %v1422 = vmul.f32 %v14, %v1398
    %v1423 = vmul.f32 %v15, %v1399
    %v1424 = vmul.f32 %v16, %v1400
    %v1425 = vmul.f32 %v17, %v1401
    %v1426 = vmul.f32 %v18, %v1402
    %v1427 = vmul.f32 %v19, %v1403
    %v1428 = vmul.f32 %v20, %v1388
    %v1429 = vmul.f32 %v21, %v1389
    %v1430 = vmul.f32 %v22, %v1390
    %v1431 = vmul.f32 %v23, %v1391
    %v1432 = vmul.f32 %v24, %v1392
    %v1433 = vmul.f32 %v25, %v1393
    %v1434 = vmul.f32 %v26, %v1394
    %v1435 = vmul.f32 %v27, %v1395
    %v1452 = vrot.slane %v1428, 7
    %v1453 = vsel %vm533, %v1452, %v1420
    %v1454 = vrot.slane %v1429, 7
    %v1455 = vsel %vm533, %v1454, %v1421
    %v1456 = vrot.slane %v1430, 7
    %v1457 = vsel %vm533, %v1456, %v1422
    %v1458 = vrot.slane %v1431, 7
    %v1459 = vsel %vm533, %v1458, %v1423
    %v1460 = vrot.slane %v1432, 7
    %v1461 = vsel %vm533, %v1460, %v1424
    %v1462 = vrot.slane %v1433, 7
    %v1463 = vsel %vm533, %v1462, %v1425
    %v1464 = vrot.slane %v1434, 7
    %v1465 = vsel %vm533, %v1464, %v1426
    %v1466 = vrot.slane %v1435, 7
    %v1467 = vsel %vm533, %v1466, %v1427
    %v1476 = vsel %vm557, %v1453, 0.0
    %v1477 = vsel %vm557, %v1455, 0.0
    %v1478 = vadd.f32 %v1476, %v1477
    %v1479 = vsel %vm557, %v1457, 0.0
    %v1480 = vadd.f32 %v1478, %v1479
    %v1481 = vsel %vm557, %v1459, 0.0
    %v1482 = vadd.f32 %v1480, %v1481
    %v1483 = vsel %vm557, %v1461, 0.0
    %v1484 = vadd.f32 %v1482, %v1483
    %v1485 = vsel %vm557, %v1463, 0.0
    %v1486 = vadd.f32 %v1484, %v1485
    %v1487 = vsel %vm557, %v1465, 0.0
    %v1488 = vadd.f32 %v1486, %v1487
    %v1489 = vsel %vm557, %v1467, 0.0
    %v1490 = vadd.f32 %v1488, %v1489
    %1491 = vadd.xlane.f32.xlu0 %v1490
    %v1492 = vpop.xlane.xlu0 %1491
    %v1493 = vmul.f32 %v1492, 0.01
    %v1494 = vsel %vm533, %v810, %v667
    %v1495 = vsel %vm533, %v812, %v668
    %v1496 = vsel %vm533, %v814, %v669
    %v1497 = vsel %vm533, %v816, %v670
    %v1498 = vsel %vm533, %v818, %v671
    %v1499 = vsel %vm533, %v820, %v672
    %v1500 = vsel %vm533, %v822, %v673
    %v1501 = vsel %vm533, %v824, %v674
    %v1510 = vmul.f32 %v1493, %v1494
    %v1511 = vmul.f32 %v1493, %v1495
    %v1512 = vmul.f32 %v1493, %v1496
    %v1513 = vmul.f32 %v1493, %v1497
    %v1514 = vmul.f32 %v1493, %v1498
    %v1515 = vmul.f32 %v1493, %v1499
    %v1516 = vmul.f32 %v1493, %v1500
    %v1517 = vmul.f32 %v1493, %v1501
    %v1526 = vrot.slane %v1510, 1
    %v1527 = vrot.slane %v1511, 1
    %v1528 = vrot.slane %v1512, 1
    %v1529 = vrot.slane %v1513, 1
    %v1530 = vrot.slane %v1514, 1
    %v1531 = vrot.slane %v1515, 1
    %v1532 = vrot.slane %v1516, 1
    %v1533 = vrot.slane %v1517, 1
    %v1542 = vadd.f32 %v1377, %v1526
    %v1543 = vadd.f32 %v1378, %v1527
    %v1544 = vadd.f32 %v1379, %v1528
    %v1545 = vadd.f32 %v1380, %v1529
    %v1546 = vadd.f32 %v1381, %v1530
    %v1547 = vadd.f32 %v1382, %v1531
    %v1548 = vadd.f32 %v1383, %v1532
    %v1549 = vadd.f32 %v1384, %v1533
    %s1550 = scalar_lea.vmem [#allocation1], 1
    %1551 = vst [vmem:[%s1550] ss:$4 sm:$0xff] %v1176
    %s1552 = scalar_lea.vmem [#allocation1], 33
    %1553 = vst [vmem:[%s1552] ss:$4 sm:$0xff] %v1177
    %v1554 = vld.sshfl [vmem:[#allocation1] sm:$0xff pattern:$0x73625140]
    %v1555 = vld.sshfl [vmem:[#allocation1 + $0x8] sm:$0xff pattern:$0x73625140]
    %v1556 = vld.sshfl [vmem:[#allocation1 + $0x10] sm:$0xff pattern:$0x73625140]
    %v1557 = vld.sshfl [vmem:[#allocation1 + $0x18] sm:$0xff pattern:$0x73625140]
    %v1558 = vld.sshfl [vmem:[#allocation1 + $0x20] sm:$0xff pattern:$0x73625140]
    %v1559 = vld.sshfl [vmem:[#allocation1 + $0x28] sm:$0xff pattern:$0x73625140]
    %v1560 = vld.sshfl [vmem:[#allocation1 + $0x30] sm:$0xff pattern:$0x73625140]
    %v1561 = vld.sshfl [vmem:[#allocation1 + $0x38] sm:$0xff pattern:$0x73625140]
    %v1562 = vrot.slane %v1554, 1
    %v1563 = vrot.slane %v1555, 1
    %v1564 = vrot.slane %v1556, 1
    %v1565 = vrot.slane %v1557, 1
    %v1566 = vrot.slane %v1558, 1
    %v1567 = vrot.slane %v1559, 1
    %v1568 = vrot.slane %v1560, 1
    %v1569 = vrot.slane %v1561, 1
    %v1586 = vmul.f32 %v12, %v1554
    %v1587 = vmul.f32 %v13, %v1555
    %v1588 = vmul.f32 %v14, %v1556
    %v1589 = vmul.f32 %v15, %v1557
    %v1590 = vmul.f32 %v16, %v1558
    %v1591 = vmul.f32 %v17, %v1559
    %v1592 = vmul.f32 %v18, %v1560
    %v1593 = vmul.f32 %v19, %v1561
    %v1594 = vmul.f32 %v20, %v1562
    %v1595 = vmul.f32 %v21, %v1563
    %v1596 = vmul.f32 %v22, %v1564
    %v1597 = vmul.f32 %v23, %v1565
    %v1598 = vmul.f32 %v24, %v1566
    %v1599 = vmul.f32 %v25, %v1567
    %v1600 = vmul.f32 %v26, %v1568
    %v1601 = vmul.f32 %v27, %v1569
    %v1618 = vrot.slane %v1594, 7
    %v1619 = vsel %vm1076, %v1618, %v1586
    %v1620 = vrot.slane %v1595, 7
    %v1621 = vsel %vm1076, %v1620, %v1587
    %v1622 = vrot.slane %v1596, 7
    %v1623 = vsel %vm1076, %v1622, %v1588
    %v1624 = vrot.slane %v1597, 7
    %v1625 = vsel %vm1076, %v1624, %v1589
    %v1626 = vrot.slane %v1598, 7
    %v1627 = vsel %vm1076, %v1626, %v1590
    %v1628 = vrot.slane %v1599, 7
    %v1629 = vsel %vm1076, %v1628, %v1591
    %v1630 = vrot.slane %v1600, 7
    %v1631 = vsel %vm1076, %v1630, %v1592
    %v1632 = vrot.slane %v1601, 7
    %v1633 = vsel %vm1076, %v1632, %v1593
    %v1642 = vsel %vm1100, %v1619, 0.0
    %v1643 = vsel %vm1100, %v1621, 0.0
    %v1644 = vadd.f32 %v1642, %v1643
    %v1645 = vsel %vm1100, %v1623, 0.0
    %v1646 = vadd.f32 %v1644, %v1645
    %v1647 = vsel %vm1100, %v1625, 0.0
    %v1648 = vadd.f32 %v1646, %v1647
    %v1649 = vsel %vm1100, %v1627, 0.0
    %v1650 = vadd.f32 %v1648, %v1649
    %v1651 = vsel %vm1100, %v1629, 0.0
    %v1652 = vadd.f32 %v1650, %v1651
    %v1653 = vsel %vm1100, %v1631, 0.0
    %v1654 = vadd.f32 %v1652, %v1653
    %v1655 = vsel %vm1100, %v1633, 0.0
    %v1656 = vadd.f32 %v1654, %v1655
    %1657 = vadd.xlane.f32.xlu0 %v1656
    %v1658 = vpop.xlane.xlu0 %1657
    %v1659 = vmul.f32 %v1658, 0.01
    %v1660 = vsel %vm1076, %v433, %v290
    %v1661 = vsel %vm1076, %v435, %v291
    %v1662 = vsel %vm1076, %v437, %v292
    %v1663 = vsel %vm1076, %v439, %v293
    %v1664 = vsel %vm1076, %v441, %v294
    %v1665 = vsel %vm1076, %v443, %v295
    %v1666 = vsel %vm1076, %v445, %v296
    %v1667 = vsel %vm1076, %v447, %v297
    %v1676 = vmul.f32 %v1659, %v1660
    %v1677 = vmul.f32 %v1659, %v1661
    %v1678 = vmul.f32 %v1659, %v1662
    %v1679 = vmul.f32 %v1659, %v1663
    %v1680 = vmul.f32 %v1659, %v1664
    %v1681 = vmul.f32 %v1659, %v1665
    %v1682 = vmul.f32 %v1659, %v1666
    %v1683 = vmul.f32 %v1659, %v1667
    %v1692 = vrot.slane %v1676, 2
    %v1693 = vrot.slane %v1677, 2
    %v1694 = vrot.slane %v1678, 2
    %v1695 = vrot.slane %v1679, 2
    %v1696 = vrot.slane %v1680, 2
    %v1697 = vrot.slane %v1681, 2
    %v1698 = vrot.slane %v1682, 2
    %v1699 = vrot.slane %v1683, 2
    %v1708 = vadd.f32 %v1542, %v1692
    %v1709 = vadd.f32 %v1543, %v1693
    %v1710 = vadd.f32 %v1544, %v1694
    %v1711 = vadd.f32 %v1545, %v1695
    %v1712 = vadd.f32 %v1546, %v1696
    %v1713 = vadd.f32 %v1547, %v1697
    %v1714 = vadd.f32 %v1548, %v1698
    %v1715 = vadd.f32 %v1549, %v1699
    %1716 = vst [vmem:[#allocation1] ss:$4 sm:$0xff] %v1176
    %s1717 = scalar_lea.vmem [#allocation1], 32
    %1718 = vst [vmem:[%s1717] ss:$4 sm:$0xff] %v1177
    %v1719 = vld.sshfl [vmem:[#allocation1] sm:$0xff pattern:$0x73625140]
    %v1720 = vld.sshfl [vmem:[#allocation1 + $0x8] sm:$0xff pattern:$0x73625140]
    %v1721 = vld.sshfl [vmem:[#allocation1 + $0x10] sm:$0xff pattern:$0x73625140]
    %v1722 = vld.sshfl [vmem:[#allocation1 + $0x18] sm:$0xff pattern:$0x73625140]
    %v1723 = vld.sshfl [vmem:[#allocation1 + $0x20] sm:$0xff pattern:$0x73625140]
    %v1724 = vld.sshfl [vmem:[#allocation1 + $0x28] sm:$0xff pattern:$0x73625140]
    %v1725 = vld.sshfl [vmem:[#allocation1 + $0x30] sm:$0xff pattern:$0x73625140]
    %v1726 = vld.sshfl [vmem:[#allocation1 + $0x38] sm:$0xff pattern:$0x73625140]
    %v1727 = vrot.slane %v1719, 5
    %v1728 = vrot.slane %v1720, 5
    %v1729 = vrot.slane %v1721, 5
    %v1730 = vrot.slane %v1722, 5
    %v1731 = vrot.slane %v1723, 5
    %v1732 = vrot.slane %v1724, 5
    %v1733 = vrot.slane %v1725, 5
    %v1734 = vrot.slane %v1726, 5
    %v1735 = vrot.slane %v1719, 6
    %v1736 = vrot.slane %v1720, 6
    %v1737 = vrot.slane %v1721, 6
    %v1738 = vrot.slane %v1722, 6
    %v1739 = vrot.slane %v1723, 6
    %v1740 = vrot.slane %v1724, 6
    %v1741 = vrot.slane %v1725, 6
    %v1742 = vrot.slane %v1726, 6
    %v1759 = vmul.f32 %v12, %v1727
    %v1760 = vmul.f32 %v13, %v1728
    %v1761 = vmul.f32 %v14, %v1729
    %v1762 = vmul.f32 %v15, %v1730
    %v1763 = vmul.f32 %v16, %v1731
    %v1764 = vmul.f32 %v17, %v1732
    %v1765 = vmul.f32 %v18, %v1733
    %v1766 = vmul.f32 %v19, %v1734
    %v1767 = vmul.f32 %v20, %v1735
    %v1768 = vmul.f32 %v21, %v1736
    %v1769 = vmul.f32 %v22, %v1737
    %v1770 = vmul.f32 %v23, %v1738
    %v1771 = vmul.f32 %v24, %v1739
    %v1772 = vmul.f32 %v25, %v1740
    %v1773 = vmul.f32 %v26, %v1741
    %v1774 = vmul.f32 %v27, %v1742
    %v1791 = vrot.slane %v1767, 7
    %vm1792 = vcmask 1044484
    %v1793 = vsel %vm1792, %v1791, %v1759
    %v1794 = vrot.slane %v1768, 7
    %v1795 = vsel %vm1792, %v1794, %v1760
    %v1796 = vrot.slane %v1769, 7
    %v1797 = vsel %vm1792, %v1796, %v1761
    %v1798 = vrot.slane %v1770, 7
    %v1799 = vsel %vm1792, %v1798, %v1762
    %v1800 = vrot.slane %v1771, 7
    %v1801 = vsel %vm1792, %v1800, %v1763
    %v1802 = vrot.slane %v1772, 7
    %v1803 = vsel %vm1792, %v1802, %v1764
    %v1804 = vrot.slane %v1773, 7
    %v1805 = vsel %vm1792, %v1804, %v1765
    %v1806 = vrot.slane %v1774, 7
    %v1807 = vsel %vm1792, %v1806, %v1766
    %vm1816 = vcmask 1044483
    %v1817 = vsel %vm1816, %v1793, 0.0
    %v1818 = vsel %vm1816, %v1795, 0.0
    %v1819 = vadd.f32 %v1817, %v1818
    %v1820 = vsel %vm1816, %v1797, 0.0
    %v1821 = vadd.f32 %v1819, %v1820
    %v1822 = vsel %vm1816, %v1799, 0.0
    %v1823 = vadd.f32 %v1821, %v1822
    %v1824 = vsel %vm1816, %v1801, 0.0
    %v1825 = vadd.f32 %v1823, %v1824
    %v1826 = vsel %vm1816, %v1803, 0.0
    %v1827 = vadd.f32 %v1825, %v1826
    %v1828 = vsel %vm1816, %v1805, 0.0
    %v1829 = vadd.f32 %v1827, %v1828
    %v1830 = vsel %vm1816, %v1807, 0.0
    %v1831 = vadd.f32 %v1829, %v1830
    %1832 = vadd.xlane.f32.xlu0 %v1831
    %v1833 = vpop.xlane.xlu0 %1832
    %v1834 = vmul.f32 %v1833, 0.01
    %v1835 = vsel %vm1792, %v159, %v12
    %v1836 = vsel %vm1792, %v161, %v13
    %v1837 = vsel %vm1792, %v163, %v14
    %v1838 = vsel %vm1792, %v165, %v15
    %v1839 = vsel %vm1792, %v167, %v16
    %v1840 = vsel %vm1792, %v169, %v17
    %v1841 = vsel %vm1792, %v171, %v18
    %v1842 = vsel %vm1792, %v173, %v19
    %v1851 = vmul.f32 %v1834, %v1835
    %v1852 = vmul.f32 %v1834, %v1836
    %v1853 = vmul.f32 %v1834, %v1837
    %v1854 = vmul.f32 %v1834, %v1838
    %v1855 = vmul.f32 %v1834, %v1839
    %v1856 = vmul.f32 %v1834, %v1840
    %v1857 = vmul.f32 %v1834, %v1841
    %v1858 = vmul.f32 %v1834, %v1842
    %v1867 = vrot.slane %v1851, 3
    %v1868 = vrot.slane %v1852, 3
    %v1869 = vrot.slane %v1853, 3
    %v1870 = vrot.slane %v1854, 3
    %v1871 = vrot.slane %v1855, 3
    %v1872 = vrot.slane %v1856, 3
    %v1873 = vrot.slane %v1857, 3
    %v1874 = vrot.slane %v1858, 3
    %v1883 = vadd.f32 %v1708, %v1867
    %v1884 = vadd.f32 %v1709, %v1868
    %v1885 = vadd.f32 %v1710, %v1869
    %v1886 = vadd.f32 %v1711, %v1870
    %v1887 = vadd.f32 %v1712, %v1871
    %v1888 = vadd.f32 %v1713, %v1872
    %v1889 = vadd.f32 %v1714, %v1873
    %v1890 = vadd.f32 %v1715, %v1874
    %s1891 = scalar_lea.vmem %s1, 64
    %v1892 = vld [vmem:[%s1891] sm:$0xff]
    %v1893 = vld [vmem:[%s1891 + $0x8] sm:$0xff]
    %v1894 = vrot.slane %v226, 4
    %v1895 = vrot.slane %v227, 4
    %v1896 = vrot.slane %v228, 4
    %v1897 = vrot.slane %v229, 4
    %v1898 = vrot.slane %v230, 4
    %v1899 = vrot.slane %v231, 4
    %v1900 = vrot.slane %v232, 4
    %v1901 = vrot.slane %v233, 4
    %v1902 = vrot.slane %v234, 4
    %v1903 = vrot.slane %v235, 4
    %v1904 = vrot.slane %v236, 4
    %v1905 = vrot.slane %v237, 4
    %v1906 = vrot.slane %v238, 4
    %v1907 = vrot.slane %v239, 4
    %v1908 = vrot.slane %v240, 4
    %v1909 = vrot.slane %v241, 4
    %v1926 = vmul.f32 %v1210, %v1894
    %v1927 = vmul.f32 %v1211, %v1895
    %v1928 = vmul.f32 %v1212, %v1896
    %v1929 = vmul.f32 %v1213, %v1897
    %v1930 = vmul.f32 %v1214, %v1898
    %v1931 = vmul.f32 %v1215, %v1899
    %v1932 = vmul.f32 %v1216, %v1900
    %v1933 = vmul.f32 %v1217, %v1901
    %v1934 = vmul.f32 %v1218, %v1902
    %v1935 = vmul.f32 %v1219, %v1903
    %v1936 = vmul.f32 %v1220, %v1904
    %v1937 = vmul.f32 %v1221, %v1905
    %v1938 = vmul.f32 %v1222, %v1906
    %v1939 = vmul.f32 %v1223, %v1907
    %v1940 = vmul.f32 %v1224, %v1908
    %v1941 = vmul.f32 %v1225, %v1909
    %1944 = vst [vmem:[#allocation1] ss:$4 sm:$0xff] %v1892
    %s1945 = scalar_lea.vmem [#allocation1], 32
    %1946 = vst [vmem:[%s1945] ss:$4 sm:$0xff] %v1893
    %v1947 = vld.sshfl [vmem:[#allocation1] sm:$0xff pattern:$0x73625140]
    %v1948 = vld.sshfl [vmem:[#allocation1 + $0x8] sm:$0xff pattern:$0x73625140]
    %v1949 = vld.sshfl [vmem:[#allocation1 + $0x10] sm:$0xff pattern:$0x73625140]
    %v1950 = vld.sshfl [vmem:[#allocation1 + $0x18] sm:$0xff pattern:$0x73625140]
    %v1951 = vld.sshfl [vmem:[#allocation1 + $0x20] sm:$0xff pattern:$0x73625140]
    %v1952 = vld.sshfl [vmem:[#allocation1 + $0x28] sm:$0xff pattern:$0x73625140]
    %v1953 = vld.sshfl [vmem:[#allocation1 + $0x30] sm:$0xff pattern:$0x73625140]
    %v1954 = vld.sshfl [vmem:[#allocation1 + $0x38] sm:$0xff pattern:$0x73625140]
    %v1955 = vrot.slane %v1947, 1
    %v1956 = vrot.slane %v1948, 1
    %v1957 = vrot.slane %v1949, 1
    %v1958 = vrot.slane %v1950, 1
    %v1959 = vrot.slane %v1951, 1
    %v1960 = vrot.slane %v1952, 1
    %v1961 = vrot.slane %v1953, 1
    %v1962 = vrot.slane %v1954, 1
    %v1979 = vmul.f32 %v12, %v1947
    %v1980 = vmul.f32 %v13, %v1948
    %v1981 = vmul.f32 %v14, %v1949
    %v1982 = vmul.f32 %v15, %v1950
    %v1983 = vmul.f32 %v16, %v1951
    %v1984 = vmul.f32 %v17, %v1952
    %v1985 = vmul.f32 %v18, %v1953
    %v1986 = vmul.f32 %v19, %v1954
    %v1987 = vmul.f32 %v20, %v1955
    %v1988 = vmul.f32 %v21, %v1956
    %v1989 = vmul.f32 %v22, %v1957
    %v1990 = vmul.f32 %v23, %v1958
    %v1991 = vmul.f32 %v24, %v1959
    %v1992 = vmul.f32 %v25, %v1960
    %v1993 = vmul.f32 %v26, %v1961
    %v1994 = vmul.f32 %v27, %v1962
    %v2011 = vrot.slane %v1987, 7
    %v2012 = vsel %vm100, %v2011, %v1979
    %v2013 = vrot.slane %v1988, 7
    %v2014 = vsel %vm100, %v2013, %v1980
    %v2015 = vrot.slane %v1989, 7
    %v2016 = vsel %vm100, %v2015, %v1981
    %v2017 = vrot.slane %v1990, 7
    %v2018 = vsel %vm100, %v2017, %v1982
    %v2019 = vrot.slane %v1991, 7
    %v2020 = vsel %vm100, %v2019, %v1983
    %v2021 = vrot.slane %v1992, 7
    %v2022 = vsel %vm100, %v2021, %v1984
    %v2023 = vrot.slane %v1993, 7
    %v2024 = vsel %vm100, %v2023, %v1985
    %v2025 = vrot.slane %v1994, 7
    %v2026 = vsel %vm100, %v2025, %v1986
    %v2035 = vsel %vm124, %v2012, 0.0
    %v2036 = vsel %vm124, %v2014, 0.0
    %v2037 = vadd.f32 %v2035, %v2036
    %v2038 = vsel %vm124, %v2016, 0.0
    %v2039 = vadd.f32 %v2037, %v2038
    %v2040 = vsel %vm124, %v2018, 0.0
    %v2041 = vadd.f32 %v2039, %v2040
    %v2042 = vsel %vm124, %v2020, 0.0
    %v2043 = vadd.f32 %v2041, %v2042
    %v2044 = vsel %vm124, %v2022, 0.0
    %v2045 = vadd.f32 %v2043, %v2044
    %v2046 = vsel %vm124, %v2024, 0.0
    %v2047 = vadd.f32 %v2045, %v2046
    %v2048 = vsel %vm124, %v2026, 0.0
    %v2049 = vadd.f32 %v2047, %v2048
    %2050 = vadd.xlane.f32.xlu0 %v2049
    %v2051 = vpop.xlane.xlu0 %2050
    %v2052 = vmul.f32 %v2051, 0.01
    %v2069 = vrot.slane %v1934, 7
    %v2070 = vsel %vm100, %v2069, %v1926
    %v2071 = vrot.slane %v1935, 7
    %v2072 = vsel %vm100, %v2071, %v1927
    %v2073 = vrot.slane %v1936, 7
    %v2074 = vsel %vm100, %v2073, %v1928
    %v2075 = vrot.slane %v1937, 7
    %v2076 = vsel %vm100, %v2075, %v1929
    %v2077 = vrot.slane %v1938, 7
    %v2078 = vsel %vm100, %v2077, %v1930
    %v2079 = vrot.slane %v1939, 7
    %v2080 = vsel %vm100, %v2079, %v1931
    %v2081 = vrot.slane %v1940, 7
    %v2082 = vsel %vm100, %v2081, %v1932
    %v2083 = vrot.slane %v1941, 7
    %v2084 = vsel %vm100, %v2083, %v1933
    %v2093 = vmul.f32 %v2052, %v2070
    %v2094 = vmul.f32 %v2052, %v2072
    %v2095 = vmul.f32 %v2052, %v2074
    %v2096 = vmul.f32 %v2052, %v2076
    %v2097 = vmul.f32 %v2052, %v2078
    %v2098 = vmul.f32 %v2052, %v2080
    %v2099 = vmul.f32 %v2052, %v2082
    %v2100 = vmul.f32 %v2052, %v2084
    %2101 = vst [vmem:[#allocation1] ss:$4 sm:$0xff] %v1892
    %s2102 = scalar_lea.vmem [#allocation1], 32
    %2103 = vst [vmem:[%s2102] ss:$4 sm:$0xff] %v1893
    %v2104 = vld.sshfl [vmem:[#allocation1] sm:$0xff pattern:$0x73625140]
    %v2105 = vld.sshfl [vmem:[#allocation1 + $0x8] sm:$0xff pattern:$0x73625140]
    %v2106 = vld.sshfl [vmem:[#allocation1 + $0x10] sm:$0xff pattern:$0x73625140]
    %v2107 = vld.sshfl [vmem:[#allocation1 + $0x18] sm:$0xff pattern:$0x73625140]
    %v2108 = vld.sshfl [vmem:[#allocation1 + $0x20] sm:$0xff pattern:$0x73625140]
    %v2109 = vld.sshfl [vmem:[#allocation1 + $0x28] sm:$0xff pattern:$0x73625140]
    %v2110 = vld.sshfl [vmem:[#allocation1 + $0x30] sm:$0xff pattern:$0x73625140]
    %v2111 = vld.sshfl [vmem:[#allocation1 + $0x38] sm:$0xff pattern:$0x73625140]
    %v2112 = vrot.slane %v2104, 7
    %v2113 = vrot.slane %v2105, 7
    %v2114 = vrot.slane %v2106, 7
    %v2115 = vrot.slane %v2107, 7
    %v2116 = vrot.slane %v2108, 7
    %v2117 = vrot.slane %v2109, 7
    %v2118 = vrot.slane %v2110, 7
    %v2119 = vrot.slane %v2111, 7
    %v2136 = vmul.f32 %v12, %v2112
    %v2137 = vmul.f32 %v13, %v2113
    %v2138 = vmul.f32 %v14, %v2114
    %v2139 = vmul.f32 %v15, %v2115
    %v2140 = vmul.f32 %v16, %v2116
    %v2141 = vmul.f32 %v17, %v2117
    %v2142 = vmul.f32 %v18, %v2118
    %v2143 = vmul.f32 %v19, %v2119
    %v2144 = vmul.f32 %v20, %v2104
    %v2145 = vmul.f32 %v21, %v2105
    %v2146 = vmul.f32 %v22, %v2106
    %v2147 = vmul.f32 %v23, %v2107
    %v2148 = vmul.f32 %v24, %v2108
    %v2149 = vmul.f32 %v25, %v2109
    %v2150 = vmul.f32 %v26, %v2110
    %v2151 = vmul.f32 %v27, %v2111
    %v2168 = vrot.slane %v2144, 7
    %v2169 = vsel %vm533, %v2168, %v2136
    %v2170 = vrot.slane %v2145, 7
    %v2171 = vsel %vm533, %v2170, %v2137
    %v2172 = vrot.slane %v2146, 7
    %v2173 = vsel %vm533, %v2172, %v2138
    %v2174 = vrot.slane %v2147, 7
    %v2175 = vsel %vm533, %v2174, %v2139
    %v2176 = vrot.slane %v2148, 7
    %v2177 = vsel %vm533, %v2176, %v2140
    %v2178 = vrot.slane %v2149, 7
    %v2179 = vsel %vm533, %v2178, %v2141
    %v2180 = vrot.slane %v2150, 7
    %v2181 = vsel %vm533, %v2180, %v2142
    %v2182 = vrot.slane %v2151, 7
    %v2183 = vsel %vm533, %v2182, %v2143
    %v2192 = vsel %vm557, %v2169, 0.0
    %v2193 = vsel %vm557, %v2171, 0.0
    %v2194 = vadd.f32 %v2192, %v2193
    %v2195 = vsel %vm557, %v2173, 0.0
    %v2196 = vadd.f32 %v2194, %v2195
    %v2197 = vsel %vm557, %v2175, 0.0
    %v2198 = vadd.f32 %v2196, %v2197
    %v2199 = vsel %vm557, %v2177, 0.0
    %v2200 = vadd.f32 %v2198, %v2199
    %v2201 = vsel %vm557, %v2179, 0.0
    %v2202 = vadd.f32 %v2200, %v2201
    %v2203 = vsel %vm557, %v2181, 0.0
    %v2204 = vadd.f32 %v2202, %v2203
    %v2205 = vsel %vm557, %v2183, 0.0
    %v2206 = vadd.f32 %v2204, %v2205
    %2207 = vadd.xlane.f32.xlu0 %v2206
    %v2208 = vpop.xlane.xlu0 %2207
    %v2209 = vmul.f32 %v2208, 0.01
    %v2210 = vsel %vm533, %v1353, %v1210
    %v2211 = vsel %vm533, %v1355, %v1211
    %v2212 = vsel %vm533, %v1357, %v1212
    %v2213 = vsel %vm533, %v1359, %v1213
    %v2214 = vsel %vm533, %v1361, %v1214
    %v2215 = vsel %vm533, %v1363, %v1215
    %v2216 = vsel %vm533, %v1365, %v1216
    %v2217 = vsel %vm533, %v1367, %v1217
    %v2226 = vmul.f32 %v2209, %v2210
    %v2227 = vmul.f32 %v2209, %v2211
    %v2228 = vmul.f32 %v2209, %v2212
    %v2229 = vmul.f32 %v2209, %v2213
    %v2230 = vmul.f32 %v2209, %v2214
    %v2231 = vmul.f32 %v2209, %v2215
    %v2232 = vmul.f32 %v2209, %v2216
    %v2233 = vmul.f32 %v2209, %v2217
    %v2242 = vrot.slane %v2226, 1
    %v2243 = vrot.slane %v2227, 1
    %v2244 = vrot.slane %v2228, 1
    %v2245 = vrot.slane %v2229, 1
    %v2246 = vrot.slane %v2230, 1
    %v2247 = vrot.slane %v2231, 1
    %v2248 = vrot.slane %v2232, 1
    %v2249 = vrot.slane %v2233, 1
    %v2258 = vadd.f32 %v2093, %v2242
    %v2259 = vadd.f32 %v2094, %v2243
    %v2260 = vadd.f32 %v2095, %v2244
    %v2261 = vadd.f32 %v2096, %v2245
    %v2262 = vadd.f32 %v2097, %v2246
    %v2263 = vadd.f32 %v2098, %v2247
    %v2264 = vadd.f32 %v2099, %v2248
    %v2265 = vadd.f32 %v2100, %v2249
    %s2266 = scalar_lea.vmem [#allocation1], 1
    %2267 = vst [vmem:[%s2266] ss:$4 sm:$0xff] %v1892
    %s2268 = scalar_lea.vmem [#allocation1], 33
    %2269 = vst [vmem:[%s2268] ss:$4 sm:$0xff] %v1893
    %v2270 = vld.sshfl [vmem:[#allocation1] sm:$0xff pattern:$0x73625140]
    %v2271 = vld.sshfl [vmem:[#allocation1 + $0x8] sm:$0xff pattern:$0x73625140]
    %v2272 = vld.sshfl [vmem:[#allocation1 + $0x10] sm:$0xff pattern:$0x73625140]
    %v2273 = vld.sshfl [vmem:[#allocation1 + $0x18] sm:$0xff pattern:$0x73625140]
    %v2274 = vld.sshfl [vmem:[#allocation1 + $0x20] sm:$0xff pattern:$0x73625140]
    %v2275 = vld.sshfl [vmem:[#allocation1 + $0x28] sm:$0xff pattern:$0x73625140]
    %v2276 = vld.sshfl [vmem:[#allocation1 + $0x30] sm:$0xff pattern:$0x73625140]
    %v2277 = vld.sshfl [vmem:[#allocation1 + $0x38] sm:$0xff pattern:$0x73625140]
    %v2278 = vrot.slane %v2270, 1
    %v2279 = vrot.slane %v2271, 1
    %v2280 = vrot.slane %v2272, 1
    %v2281 = vrot.slane %v2273, 1
    %v2282 = vrot.slane %v2274, 1
    %v2283 = vrot.slane %v2275, 1
    %v2284 = vrot.slane %v2276, 1
    %v2285 = vrot.slane %v2277, 1
    %v2302 = vmul.f32 %v12, %v2270
    %v2303 = vmul.f32 %v13, %v2271
    %v2304 = vmul.f32 %v14, %v2272
    %v2305 = vmul.f32 %v15, %v2273
    %v2306 = vmul.f32 %v16, %v2274
    %v2307 = vmul.f32 %v17, %v2275
    %v2308 = vmul.f32 %v18, %v2276
    %v2309 = vmul.f32 %v19, %v2277
    %v2310 = vmul.f32 %v20, %v2278
    %v2311 = vmul.f32 %v21, %v2279
    %v2312 = vmul.f32 %v22, %v2280
    %v2313 = vmul.f32 %v23, %v2281
    %v2314 = vmul.f32 %v24, %v2282
    %v2315 = vmul.f32 %v25, %v2283
    %v2316 = vmul.f32 %v26, %v2284
    %v2317 = vmul.f32 %v27, %v2285
    %v2334 = vrot.slane %v2310, 7
    %v2335 = vsel %vm1076, %v2334, %v2302
    %v2336 = vrot.slane %v2311, 7
    %v2337 = vsel %vm1076, %v2336, %v2303
    %v2338 = vrot.slane %v2312, 7
    %v2339 = vsel %vm1076, %v2338, %v2304
    %v2340 = vrot.slane %v2313, 7
    %v2341 = vsel %vm1076, %v2340, %v2305
    %v2342 = vrot.slane %v2314, 7
    %v2343 = vsel %vm1076, %v2342, %v2306
    %v2344 = vrot.slane %v2315, 7
    %v2345 = vsel %vm1076, %v2344, %v2307
    %v2346 = vrot.slane %v2316, 7
    %v2347 = vsel %vm1076, %v2346, %v2308
    %v2348 = vrot.slane %v2317, 7
    %v2349 = vsel %vm1076, %v2348, %v2309
    %v2358 = vsel %vm1100, %v2335, 0.0
    %v2359 = vsel %vm1100, %v2337, 0.0
    %v2360 = vadd.f32 %v2358, %v2359
    %v2361 = vsel %vm1100, %v2339, 0.0
    %v2362 = vadd.f32 %v2360, %v2361
    %v2363 = vsel %vm1100, %v2341, 0.0
    %v2364 = vadd.f32 %v2362, %v2363
    %v2365 = vsel %vm1100, %v2343, 0.0
    %v2366 = vadd.f32 %v2364, %v2365
    %v2367 = vsel %vm1100, %v2345, 0.0
    %v2368 = vadd.f32 %v2366, %v2367
    %v2369 = vsel %vm1100, %v2347, 0.0
    %v2370 = vadd.f32 %v2368, %v2369
    %v2371 = vsel %vm1100, %v2349, 0.0
    %v2372 = vadd.f32 %v2370, %v2371
    %2373 = vadd.xlane.f32.xlu0 %v2372
    %v2374 = vpop.xlane.xlu0 %2373
    %v2375 = vmul.f32 %v2374, 0.01
    %v2376 = vsel %vm1076, %v810, %v667
    %v2377 = vsel %vm1076, %v812, %v668
    %v2378 = vsel %vm1076, %v814, %v669
    %v2379 = vsel %vm1076, %v816, %v670
    %v2380 = vsel %vm1076, %v818, %v671
    %v2381 = vsel %vm1076, %v820, %v672
    %v2382 = vsel %vm1076, %v822, %v673
    %v2383 = vsel %vm1076, %v824, %v674
    %v2392 = vmul.f32 %v2375, %v2376
    %v2393 = vmul.f32 %v2375, %v2377
    %v2394 = vmul.f32 %v2375, %v2378
    %v2395 = vmul.f32 %v2375, %v2379
    %v2396 = vmul.f32 %v2375, %v2380
    %v2397 = vmul.f32 %v2375, %v2381
    %v2398 = vmul.f32 %v2375, %v2382
    %v2399 = vmul.f32 %v2375, %v2383
    %v2408 = vrot.slane %v2392, 2
    %v2409 = vrot.slane %v2393, 2
    %v2410 = vrot.slane %v2394, 2
    %v2411 = vrot.slane %v2395, 2
    %v2412 = vrot.slane %v2396, 2
    %v2413 = vrot.slane %v2397, 2
    %v2414 = vrot.slane %v2398, 2
    %v2415 = vrot.slane %v2399, 2
    %v2424 = vadd.f32 %v2258, %v2408
    %v2425 = vadd.f32 %v2259, %v2409
    %v2426 = vadd.f32 %v2260, %v2410
    %v2427 = vadd.f32 %v2261, %v2411
    %v2428 = vadd.f32 %v2262, %v2412
    %v2429 = vadd.f32 %v2263, %v2413
    %v2430 = vadd.f32 %v2264, %v2414
    %v2431 = vadd.f32 %v2265, %v2415
    %2432 = vst [vmem:[#allocation1] ss:$4 sm:$0xff] %v1892
    %s2433 = scalar_lea.vmem [#allocation1], 32
    %2434 = vst [vmem:[%s2433] ss:$4 sm:$0xff] %v1893
    %v2435 = vld.sshfl [vmem:[#allocation1] sm:$0xff pattern:$0x73625140]
    %v2436 = vld.sshfl [vmem:[#allocation1 + $0x8] sm:$0xff pattern:$0x73625140]
    %v2437 = vld.sshfl [vmem:[#allocation1 + $0x10] sm:$0xff pattern:$0x73625140]
    %v2438 = vld.sshfl [vmem:[#allocation1 + $0x18] sm:$0xff pattern:$0x73625140]
    %v2439 = vld.sshfl [vmem:[#allocation1 + $0x20] sm:$0xff pattern:$0x73625140]
    %v2440 = vld.sshfl [vmem:[#allocation1 + $0x28] sm:$0xff pattern:$0x73625140]
    %v2441 = vld.sshfl [vmem:[#allocation1 + $0x30] sm:$0xff pattern:$0x73625140]
    %v2442 = vld.sshfl [vmem:[#allocation1 + $0x38] sm:$0xff pattern:$0x73625140]
    %v2443 = vrot.slane %v2435, 5
    %v2444 = vrot.slane %v2436, 5
    %v2445 = vrot.slane %v2437, 5
    %v2446 = vrot.slane %v2438, 5
    %v2447 = vrot.slane %v2439, 5
    %v2448 = vrot.slane %v2440, 5
    %v2449 = vrot.slane %v2441, 5
    %v2450 = vrot.slane %v2442, 5
    %v2451 = vrot.slane %v2435, 6
    %v2452 = vrot.slane %v2436, 6
    %v2453 = vrot.slane %v2437, 6
    %v2454 = vrot.slane %v2438, 6
    %v2455 = vrot.slane %v2439, 6
    %v2456 = vrot.slane %v2440, 6
    %v2457 = vrot.slane %v2441, 6
    %v2458 = vrot.slane %v2442, 6
    %v2475 = vmul.f32 %v12, %v2443
    %v2476 = vmul.f32 %v13, %v2444
    %v2477 = vmul.f32 %v14, %v2445
    %v2478 = vmul.f32 %v15, %v2446
    %v2479 = vmul.f32 %v16, %v2447
    %v2480 = vmul.f32 %v17, %v2448
    %v2481 = vmul.f32 %v18, %v2449
    %v2482 = vmul.f32 %v19, %v2450
    %v2483 = vmul.f32 %v20, %v2451
    %v2484 = vmul.f32 %v21, %v2452
    %v2485 = vmul.f32 %v22, %v2453
    %v2486 = vmul.f32 %v23, %v2454
    %v2487 = vmul.f32 %v24, %v2455
    %v2488 = vmul.f32 %v25, %v2456
    %v2489 = vmul.f32 %v26, %v2457
    %v2490 = vmul.f32 %v27, %v2458
    %v2507 = vrot.slane %v2483, 7
    %v2508 = vsel %vm1792, %v2507, %v2475
    %v2509 = vrot.slane %v2484, 7
    %v2510 = vsel %vm1792, %v2509, %v2476
    %v2511 = vrot.slane %v2485, 7
    %v2512 = vsel %vm1792, %v2511, %v2477
    %v2513 = vrot.slane %v2486, 7
    %v2514 = vsel %vm1792, %v2513, %v2478
    %v2515 = vrot.slane %v2487, 7
    %v2516 = vsel %vm1792, %v2515, %v2479
    %v2517 = vrot.slane %v2488, 7
    %v2518 = vsel %vm1792, %v2517, %v2480
    %v2519 = vrot.slane %v2489, 7
    %v2520 = vsel %vm1792, %v2519, %v2481
    %v2521 = vrot.slane %v2490, 7
    %v2522 = vsel %vm1792, %v2521, %v2482
    %v2531 = vsel %vm1816, %v2508, 0.0
    %v2532 = vsel %vm1816, %v2510, 0.0
    %v2533 = vadd.f32 %v2531, %v2532
    %v2534 = vsel %vm1816, %v2512, 0.0
    %v2535 = vadd.f32 %v2533, %v2534
    %v2536 = vsel %vm1816, %v2514, 0.0
    %v2537 = vadd.f32 %v2535, %v2536
    %v2538 = vsel %vm1816, %v2516, 0.0
    %v2539 = vadd.f32 %v2537, %v2538
    %v2540 = vsel %vm1816, %v2518, 0.0
    %v2541 = vadd.f32 %v2539, %v2540
    %v2542 = vsel %vm1816, %v2520, 0.0
    %v2543 = vadd.f32 %v2541, %v2542
    %v2544 = vsel %vm1816, %v2522, 0.0
    %v2545 = vadd.f32 %v2543, %v2544
    %2546 = vadd.xlane.f32.xlu0 %v2545
    %v2547 = vpop.xlane.xlu0 %2546
    %v2548 = vmul.f32 %v2547, 0.01
    %v2549 = vsel %vm1792, %v433, %v290
    %v2550 = vsel %vm1792, %v435, %v291
    %v2551 = vsel %vm1792, %v437, %v292
    %v2552 = vsel %vm1792, %v439, %v293
    %v2553 = vsel %vm1792, %v441, %v294
    %v2554 = vsel %vm1792, %v443, %v295
    %v2555 = vsel %vm1792, %v445, %v296
    %v2556 = vsel %vm1792, %v447, %v297
    %v2565 = vmul.f32 %v2548, %v2549
    %v2566 = vmul.f32 %v2548, %v2550
    %v2567 = vmul.f32 %v2548, %v2551
    %v2568 = vmul.f32 %v2548, %v2552
    %v2569 = vmul.f32 %v2548, %v2553
    %v2570 = vmul.f32 %v2548, %v2554
    %v2571 = vmul.f32 %v2548, %v2555
    %v2572 = vmul.f32 %v2548, %v2556
    %v2581 = vrot.slane %v2565, 3
    %v2582 = vrot.slane %v2566, 3
    %v2583 = vrot.slane %v2567, 3
    %v2584 = vrot.slane %v2568, 3
    %v2585 = vrot.slane %v2569, 3
    %v2586 = vrot.slane %v2570, 3
    %v2587 = vrot.slane %v2571, 3
    %v2588 = vrot.slane %v2572, 3
    %v2597 = vadd.f32 %v2424, %v2581
    %v2598 = vadd.f32 %v2425, %v2582
    %v2599 = vadd.f32 %v2426, %v2583
    %v2600 = vadd.f32 %v2427, %v2584
    %v2601 = vadd.f32 %v2428, %v2585
    %v2602 = vadd.f32 %v2429, %v2586
    %v2603 = vadd.f32 %v2430, %v2587
    %v2604 = vadd.f32 %v2431, %v2588
    %s2605 = scalar_lea.vmem [#allocation1], 2
    %2606 = vst [vmem:[%s2605] ss:$4 sm:$0xff] %v1892
    %s2607 = scalar_lea.vmem [#allocation1], 34
    %2608 = vst [vmem:[%s2607] ss:$4 sm:$0xff] %v1893
    %v2609 = vld.sshfl [vmem:[#allocation1] sm:$0xff pattern:$0x73625140]
    %v2610 = vld.sshfl [vmem:[#allocation1 + $0x8] sm:$0xff pattern:$0x73625140]
    %v2611 = vld.sshfl [vmem:[#allocation1 + $0x10] sm:$0xff pattern:$0x73625140]
    %v2612 = vld.sshfl [vmem:[#allocation1 + $0x18] sm:$0xff pattern:$0x73625140]
    %v2613 = vld.sshfl [vmem:[#allocation1 + $0x20] sm:$0xff pattern:$0x73625140]
    %v2614 = vld.sshfl [vmem:[#allocation1 + $0x28] sm:$0xff pattern:$0x73625140]
    %v2615 = vld.sshfl [vmem:[#allocation1 + $0x30] sm:$0xff pattern:$0x73625140]
    %v2616 = vld.sshfl [vmem:[#allocation1 + $0x38] sm:$0xff pattern:$0x73625140]
    %v2617 = vrot.slane %v2609, 1
    %v2618 = vrot.slane %v2610, 1
    %v2619 = vrot.slane %v2611, 1
    %v2620 = vrot.slane %v2612, 1
    %v2621 = vrot.slane %v2613, 1
    %v2622 = vrot.slane %v2614, 1
    %v2623 = vrot.slane %v2615, 1
    %v2624 = vrot.slane %v2616, 1
    %v2641 = vmul.f32 %v12, %v2609
    %v2642 = vmul.f32 %v13, %v2610
    %v2643 = vmul.f32 %v14, %v2611
    %v2644 = vmul.f32 %v15, %v2612
    %v2645 = vmul.f32 %v16, %v2613
    %v2646 = vmul.f32 %v17, %v2614
    %v2647 = vmul.f32 %v18, %v2615
    %v2648 = vmul.f32 %v19, %v2616
    %v2649 = vmul.f32 %v20, %v2617
    %v2650 = vmul.f32 %v21, %v2618
    %v2651 = vmul.f32 %v22, %v2619
    %v2652 = vmul.f32 %v23, %v2620
    %v2653 = vmul.f32 %v24, %v2621
    %v2654 = vmul.f32 %v25, %v2622
    %v2655 = vmul.f32 %v26, %v2623
    %v2656 = vmul.f32 %v27, %v2624
    %v2673 = vrot.slane %v2649, 7
    %vm2674 = vcmask 1045509
    %v2675 = vsel %vm2674, %v2673, %v2641
    %v2676 = vrot.slane %v2650, 7
    %v2677 = vsel %vm2674, %v2676, %v2642
    %v2678 = vrot.slane %v2651, 7
    %v2679 = vsel %vm2674, %v2678, %v2643
    %v2680 = vrot.slane %v2652, 7
    %v2681 = vsel %vm2674, %v2680, %v2644
    %v2682 = vrot.slane %v2653, 7
    %v2683 = vsel %vm2674, %v2682, %v2645
    %v2684 = vrot.slane %v2654, 7
    %v2685 = vsel %vm2674, %v2684, %v2646
    %v2686 = vrot.slane %v2655, 7
    %v2687 = vsel %vm2674, %v2686, %v2647
    %v2688 = vrot.slane %v2656, 7
    %v2689 = vsel %vm2674, %v2688, %v2648
    %vm2698 = vcmask 1045508
    %v2699 = vsel %vm2698, %v2675, 0.0
    %v2700 = vsel %vm2698, %v2677, 0.0
    %v2701 = vadd.f32 %v2699, %v2700
    %v2702 = vsel %vm2698, %v2679, 0.0
    %v2703 = vadd.f32 %v2701, %v2702
    %v2704 = vsel %vm2698, %v2681, 0.0
    %v2705 = vadd.f32 %v2703, %v2704
    %v2706 = vsel %vm2698, %v2683, 0.0
    %v2707 = vadd.f32 %v2705, %v2706
    %v2708 = vsel %vm2698, %v2685, 0.0
    %v2709 = vadd.f32 %v2707, %v2708
    %v2710 = vsel %vm2698, %v2687, 0.0
    %v2711 = vadd.f32 %v2709, %v2710
    %v2712 = vsel %vm2698, %v2689, 0.0
    %v2713 = vadd.f32 %v2711, %v2712
    %2714 = vadd.xlane.f32.xlu0 %v2713
    %v2715 = vpop.xlane.xlu0 %2714
    %v2716 = vmul.f32 %v2715, 0.01
    %v2717 = vsel %vm2674, %v159, %v12
    %v2718 = vsel %vm2674, %v161, %v13
    %v2719 = vsel %vm2674, %v163, %v14
    %v2720 = vsel %vm2674, %v165, %v15
    %v2721 = vsel %vm2674, %v167, %v16
    %v2722 = vsel %vm2674, %v169, %v17
    %v2723 = vsel %vm2674, %v171, %v18
    %v2724 = vsel %vm2674, %v173, %v19
    %v2733 = vmul.f32 %v2716, %v2717
    %v2734 = vmul.f32 %v2716, %v2718
    %v2735 = vmul.f32 %v2716, %v2719
    %v2736 = vmul.f32 %v2716, %v2720
    %v2737 = vmul.f32 %v2716, %v2721
    %v2738 = vmul.f32 %v2716, %v2722
    %v2739 = vmul.f32 %v2716, %v2723
    %v2740 = vmul.f32 %v2716, %v2724
    %v2749 = vrot.slane %v2733, 4
    %v2750 = vrot.slane %v2734, 4
    %v2751 = vrot.slane %v2735, 4
    %v2752 = vrot.slane %v2736, 4
    %v2753 = vrot.slane %v2737, 4
    %v2754 = vrot.slane %v2738, 4
    %v2755 = vrot.slane %v2739, 4
    %v2756 = vrot.slane %v2740, 4
    %v2765 = vadd.f32 %v2597, %v2749
    %v2766 = vadd.f32 %v2598, %v2750
    %v2767 = vadd.f32 %v2599, %v2751
    %v2768 = vadd.f32 %v2600, %v2752
    %v2769 = vadd.f32 %v2601, %v2753
    %v2770 = vadd.f32 %v2602, %v2754
    %v2771 = vadd.f32 %v2603, %v2755
    %v2772 = vadd.f32 %v2604, %v2756
    %v2773 = vpack.c.bf16 %v184, %v183
    %v2774 = vpack.c.bf16 %v186, %v185
    %v2775 = vpack.c.bf16 %v188, %v187
    %v2776 = vpack.c.bf16 %v190, %v189
    %v2777 = vpack.c.bf16 %v625, %v624
    %v2778 = vpack.c.bf16 %v627, %v626
    %v2779 = vpack.c.bf16 %v629, %v628
    %v2780 = vpack.c.bf16 %v631, %v630
    %v2781 = vpack.c.bf16 %v1168, %v1167
    %v2782 = vpack.c.bf16 %v1170, %v1169
    %v2783 = vpack.c.bf16 %v1172, %v1171
    %v2784 = vpack.c.bf16 %v1174, %v1173
    %v2785 = vpack.c.bf16 %v1884, %v1883
    %v2786 = vpack.c.bf16 %v1886, %v1885
    %v2787 = vpack.c.bf16 %v1888, %v1887
    %v2788 = vpack.c.bf16 %v1890, %v1889
    %v2789 = vpack.c.bf16 %v2766, %v2765
    %v2790 = vpack.c.bf16 %v2768, %v2767
    %v2791 = vpack.c.bf16 %v2770, %v2769
    %v2792 = vpack.c.bf16 %v2772, %v2771
    %v2813 = vrot.slane %v2773, 3
    %v2814 = vrot.slane %v2774, 6
    %v2815 = vrot.slane %v2774, 1
    %v2816 = vrot.slane %v2775, 4
    %v2817 = vrot.slane %v2775, 7
    %v2818 = vrot.slane %v2776, 2
    %v2819 = vrot.slane %v2776, 5
    %v2820 = vrot.slane %v2777, 3
    %v2821 = vrot.slane %v2778, 6
    %v2822 = vrot.slane %v2778, 1
    %v2823 = vrot.slane %v2779, 4
    %v2824 = vrot.slane %v2779, 7
    %v2825 = vrot.slane %v2780, 2
    %v2826 = vrot.slane %v2780, 5
    %v2827 = vrot.slane %v2781, 3
    %v2828 = vrot.slane %v2782, 6
    %v2829 = vrot.slane %v2782, 1
    %v2830 = vrot.slane %v2783, 4
    %v2831 = vrot.slane %v2783, 7
    %v2832 = vrot.slane %v2784, 2
    %v2833 = vrot.slane %v2784, 5
    %v2834 = vrot.slane %v2785, 3
    %v2835 = vrot.slane %v2786, 6
    %v2836 = vrot.slane %v2786, 1
    %v2837 = vrot.slane %v2787, 4
    %v2838 = vrot.slane %v2787, 7
    %v2839 = vrot.slane %v2788, 2
    %v2840 = vrot.slane %v2788, 5
    %v2841 = vrot.slane %v2789, 3
    %v2842 = vrot.slane %v2790, 6
    %v2843 = vrot.slane %v2790, 1
    %v2844 = vrot.slane %v2791, 4
    %v2845 = vrot.slane %v2791, 7
    %v2846 = vrot.slane %v2792, 2
    %v2847 = vrot.slane %v2792, 5
    %vm2848 = vcmask 1040384
    %v2851 = vsel %vm2848, %v2773, %v2813
    %v2854 = vsel %vm533, %v2814, %v2815
    %v2855 = vsel %vm124, %v2851, %v2854
    %v2858 = vsel %vm1792, %v2816, %v2817
    %vm2859 = vcmask 1046534
    %v2862 = vsel %vm2859, %v2818, %v2819
    %v2863 = vsel %vm2698, %v2858, %v2862
    %vm2864 = vcmask 1043456
    %v2865 = vsel %vm2864, %v2855, %v2863
    %v2868 = vsel %vm2848, %v2777, %v2820
    %v2871 = vsel %vm533, %v2821, %v2822
    %v2872 = vsel %vm124, %v2868, %v2871
    %v2875 = vsel %vm1792, %v2823, %v2824
    %v2878 = vsel %vm2859, %v2825, %v2826
    %v2879 = vsel %vm2698, %v2875, %v2878
    %v2880 = vsel %vm2864, %v2872, %v2879
    %v2883 = vsel %vm2848, %v2781, %v2827
    %v2886 = vsel %vm533, %v2828, %v2829
    %v2887 = vsel %vm124, %v2883, %v2886
    %v2890 = vsel %vm1792, %v2830, %v2831
    %v2893 = vsel %vm2859, %v2832, %v2833
    %v2894 = vsel %vm2698, %v2890, %v2893
    %v2895 = vsel %vm2864, %v2887, %v2894
    %v2898 = vsel %vm2848, %v2785, %v2834
    %v2901 = vsel %vm533, %v2835, %v2836
    %v2902 = vsel %vm124, %v2898, %v2901
    %v2905 = vsel %vm1792, %v2837, %v2838
    %v2908 = vsel %vm2859, %v2839, %v2840
    %v2909 = vsel %vm2698, %v2905, %v2908
    %v2910 = vsel %vm2864, %v2902, %v2909
    %v2913 = vsel %vm2848, %v2789, %v2841
    %v2916 = vsel %vm533, %v2842, %v2843
    %v2917 = vsel %vm124, %v2913, %v2916
    %v2920 = vsel %vm1792, %v2844, %v2845
    %v2923 = vsel %vm2859, %v2846, %v2847
    %v2924 = vsel %vm2698, %v2920, %v2923
    %v2925 = vsel %vm2864, %v2917, %v2924
    %2931 = vst [vmem:[#allocation2] sm:$0xff] %v2865
    %2932 = vst [vmem:[#allocation2 + $0x8] sm:$0xff] %v2880
    %2933 = vst [vmem:[#allocation2 + $0x10] sm:$0xff] %v2895
    %2934 = vst [vmem:[#allocation2 + $0x18] sm:$0xff] %v2910
    %2935 = vst [vmem:[#allocation2 + $0x20] sm:$0xff] %v2925
    // Predicated region
    $region10: #{tpu_custom_call.1} parent=1 // pred_check
      _
    $region11: #{tpu_custom_call.1} parent=1 // pred_check_branch
      %2937 = sbr.rel (0) target = $region13
    $region12: #{tpu_custom_call.1} parent=1 // pred_region
      %2939 = vsyncadd [#allocation3], 0
      %s2940 = sshll.u32 [#allocation2], 4
      %s2941 = int_to_ptr.vmem [resolvable:$true] %s2940
      %s2942 = sshll.u32 %s2, 4
      %s2943 = int_to_ptr.hbm [resolvable:$true] %s2942
      %2948 = dma.vmem_to_hbm [thread:$0]  %s2941, 640, %s2943, [#allocation3], 128, 128, 8
    $region13: #{tpu_custom_call.1} parent=1 // pred_fallthru
      _
    // Predicated region
    $region14: #{tpu_custom_call.1} parent=1 // pred_check
      _
    $region15: #{tpu_custom_call.1} parent=1 // pred_check_branch
      %2950 = sbr.rel (0) target = $region17
    $region16: #{tpu_custom_call.1} parent=1 // pred_region
      %2952 = dma.done [#allocation3], 640
    $region17: #{tpu_custom_call.1} parent=1 // pred_fallthru
      _
    %2953 = vsyncpa [#allocation3], 1

</llo_original>
